<compile_context>
chip_gen: v6e
topology: v6e:2x2x1
jax: 0.10.0
libtpu: 0.0.40
codegen_flags: <defaults>
</compile_context>

<pallas_src>
import math

import jax
import jax.numpy as jnp
from jax import lax
from jax.experimental import pallas as pl
from jax.experimental.pallas import tpu as pltpu


def _round_up(x, m):
    return ((x + m - 1) // m) * m


def _vmem_capacity_bytes():
    """Per-core physical VMEM; conservative fallback if the query is unavailable."""
    try:
        return int(pltpu.get_tpu_info().vmem_capacity_bytes)
    except Exception:
        return 64 * 2**20   # v7x per-TensorCore (smallest across v5e/v6e/v7x)


# ---------------------------------------------------------------------------
# Kernel: one row tile of the B*L flattened target rows per grid step.
#   x_ref   : (TM, d_model) f32     row tile of the target embedding
#   qk_ref  : (H, d_model, S) bf16  prepacked scale * Wq_h^T @ K_h^T
#   sb_ref  : (H, 1, S)      f32    prepacked scale * bq_h @ K_h^T
#   vwo_ref : (H, S, d_out)  bf16   prepacked V_h @ Wo_h^T
#   bo_ref  : (1, d_out)     f32    output-projection bias
#   o_ref   : (TM, d_out)           output tile (lane-dense 64-wide store)
# ---------------------------------------------------------------------------
def _reprogramming_kernel(x_ref, qk_ref, sb_ref, vwo_ref, bo_ref, o_ref):
    f32 = jnp.float32
    dims = (((1,), (0,)), ((), ()))                       # contract rows x cols

    n_heads = qk_ref.shape[0]
    x = x_ref[...].astype(qk_ref.dtype)                   # bf16 MXU operand

    y_acc = jnp.zeros((x.shape[0], o_ref.shape[-1]), f32)
    for h in range(n_heads):                              # H is small; temps die each iteration
        # scores_h = x @ QK_h + SB_h  (Wq, bq and 1/sqrt(E) already folded in)
        s = lax.dot_general(x, qk_ref[h], dims,
                            preferred_element_type=f32) + sb_ref[h]       # (TM, S) f32
        # f32 softmax over S (v5e has no bf16 VPU/EUP; accuracy-critical path)
        m = jnp.max(s, axis=-1, keepdims=True)
        p = jnp.exp(s - m)
        inv_l = pl.reciprocal(jnp.sum(p, axis=-1, keepdims=True), approx=False)
        # out_h = softmax(scores_h) @ VWo_h; normalization applied to the (TM, d_out)
        # result instead of the (TM, S) probabilities (fewer VPU muls when S > d_out).
        yh = lax.dot_general(p.astype(vwo_ref.dtype), vwo_ref[h], dims,
                             preferred_element_type=f32)                  # (TM, d_out)
        y_acc = y_acc + yh * inv_l

    o_ref[...] = (y_acc + bo_ref[...]).astype(o_ref.dtype)


# ---------------------------------------------------------------------------
# Module forward (one-time wrapper prepack + single pallas_call)
# ---------------------------------------------------------------------------
def reprogramming_layer_forward(params, target_embedding, source_embedding,
                                value_embedding, seq, *, row_tile=None,
                                matmul_dtype=jnp.bfloat16):
    # TODO(synk): `seq` only gates the module's saved_* side-effect buffers; it has no
    #             effect on the returned tensor, so it is unused here.
    del seq

    B, L, d_model = target_embedding.shape
    S, _ = source_embedding.shape
    H = int(params["n_heads"])
    inner = params["wq"].shape[0]          # H * d_keys
    d_out = params["wo"].shape[0]          # 64
    E = inner // H
    scale = 1.0 / math.sqrt(E)
    f32 = jnp.float32

    # ---- One-time prep, hoisted out of the grid (independent of B*L) -------------------
    k = (source_embedding @ params["wk"].T + params["bk"]).reshape(S, H, E)
    v = (value_embedding @ params["wv"].T + params["bv"]).reshape(S, H, E)
    wq_h = params["wq"].reshape(H, E, d_model)
    bq_h = params["bq"].reshape(H, 1, E)
    wo_h = params["wo"].reshape(d_out, H, E)

    qk = (scale * jnp.einsum("hed,she->hds", wq_h, k)).astype(matmul_dtype)   # (H, d_model, S)
    sb = (scale * jnp.einsum("hxe,she->hxs", bq_h, k)).astype(f32)            # (H, 1, S)
    vwo = jnp.einsum("she,dhe->hsd", v, wo_h).astype(matmul_dtype)            # (H, S, d_out)
    bo = params["bo"].reshape(1, d_out).astype(f32)

    # ---- Row-tile sizing and VMEM budget ------------------------------------------------
    N = B * L
    cap = _vmem_capacity_bytes()
    budget = int(0.8 * cap)
    if row_tile is None:
        row_tile = 2048 if cap >= 96 * 2**20 else 1024     # v5e/v6e vs v7x
    tm = min(row_tile, _round_up(N, 8))

    # Worst-case resident footprint (x2 covers default double-buffering if Buffered(1)
    # is unavailable on this JAX version).
    resident = 2 * (qk.nbytes + sb.nbytes + vwo.nbytes + bo.nbytes)

    def vmem_need(tm_):
        io = 2 * tm_ * (d_model + d_out) * 4                # double-buffered x / out tiles
        temps = tm_ * (4 * S + 2 * d_out) * 4               # live (TM,S)/(TM,d_out) f32 temps
        return resident + io + temps + (4 << 20)            # + compiler scratch slack

    while tm > 8 and vmem_need(tm) > budget:
        tm = max(8, _round_up(tm // 2, 8))
    vmem_limit = int(min(max(vmem_need(tm), 16 << 20), max(budget, 16 << 20)))

    n_pad = _round_up(N, tm)
    x = target_embedding.reshape(N, d_model)
    if n_pad != N:
        x = jnp.pad(x, ((0, n_pad - N), (0, 0)))

    cost = pl.CostEstimate(
        flops=int(2 * n_pad * H * S * (d_model + d_out)),
        transcendentals=int(n_pad * H * S),
        bytes_accessed=int(x.nbytes + qk.nbytes + sb.nbytes + vwo.nbytes
                           + bo.nbytes + n_pad * d_out * 4),
    )

    idx0 = {2: (lambda i: (0, 0)), 3: (lambda i: (0, 0, 0))}

    def build_call(single_buffer_residents):
        def const_spec(shape):
            if single_buffer_residents:
                return pl.BlockSpec(shape, idx0[len(shape)], pipeline_mode=pl.Buffered(1))
            return pl.BlockSpec(shape, idx0[len(shape)])

        return pl.pallas_call(
            _reprogramming_kernel,
            out_shape=jax.ShapeDtypeStruct((n_pad, d_out), target_embedding.dtype),
            grid=(n_pad // tm,),
            in_specs=[
                pl.BlockSpec((tm, d_model), lambda i: (i, 0)),   # x (row-tiled)
                const_spec((H, d_model, S)),                     # QK  (resident)
                const_spec((H, 1, S)),                           # SB  (resident)
                const_spec((H, S, d_out)),                       # VWo (resident)
                const_spec((1, d_out)),                          # bo  (resident)
            ],
            out_specs=pl.BlockSpec((tm, d_out), lambda i: (i, 0)),
            compiler_params=pltpu.CompilerParams(
                dimension_semantics=("parallel",),
                vmem_limit_bytes=vmem_limit),
            cost_estimate=cost,
        )

    try:
        # Constant-index inputs single-buffered (halves their VMEM residency).
        out = build_call(True)(x, qk, sb, vwo, bo)
    except Exception:
        # Fallback for JAX versions that reject pipeline_mode / pl.Buffered(1).
        out = build_call(False)(x, qk, sb, vwo, bo)

    return out[:N].reshape(B, L, d_out)


# ---------------------------------------------------------------------------
# Pure-JAX (f32) reference mirroring the torch module
# ---------------------------------------------------------------------------
def reference_forward(params, target_embedding, source_embedding,
                      value_embedding, seq):
    B, L, _ = target_embedding.shape
    S, _ = source_embedding.shape
    H = params["n_heads"]
    q = target_embedding @ params["wq"].T + params["bq"]
    k = source_embedding @ params["wk"].T + params["bk"]
    v = value_embedding @ params["wv"].T + params["bv"]
    E = q.shape[-1] // H
    q = q.reshape(B, L, H, E)
    k = k.reshape(S, H, E)
    v = v.reshape(S, H, E)
    scale = 1.0 / math.sqrt(E)
    scores = jnp.einsum("blhe,she->bhls", q, k)
    a = jax.nn.softmax(scale * scores, axis=-1)
    out = jnp.einsum("bhls,she->blhe", a, v).reshape(B, L, H * E)
    return out @ params["wo"].T + params["bo"]


# ---------------------------------------------------------------------------
# Deterministic parameter init (torch nn.Linear layout: weight (out, in))
# ---------------------------------------------------------------------------
def init_params(key, d_model, n_heads, d_llm, d_keys=None, d_out=64):
    d_keys = d_keys or d_model // n_heads
    inner = d_keys * n_heads
    ks = jax.random.split(key, 8)

    def lin(kw, kb, d_in, d_o):
        bound = 1.0 / math.sqrt(d_in)
        w = jax.random.uniform(kw, (d_o, d_in), jnp.float32, -bound, bound)
        b = jax.random.uniform(kb, (d_o,), jnp.float32, -bound, bound)
        return w, b

    wq, bq = lin(ks[0], ks[1], d_model, inner)
    wk, bk = lin(ks[2], ks[3], d_llm, inner)
    wv, bv = lin(ks[4], ks[5], d_llm, inner)
    wo, bo = lin(ks[6], ks[7], inner, d_out)
    return dict(wq=wq, bq=bq, wk=wk, bk=bk, wv=wv, bv=bv, wo=wo, bo=bo,
                n_heads=n_heads)


if __name__ == "__main__":
    # Small shapes consistent with the module's forward.
    B, L = 2, 8
    d_model, n_heads = 32, 4          # d_keys = d_model // n_heads = 8
    d_llm, S = 64, 16

    key = jax.random.PRNGKey(0)
    kp, k1, k2, k3, k4 = jax.random.split(key, 5)

    params = init_params(kp, d_model, n_heads, d_llm)

    target_embedding = jax.random.normal(k1, (B, L, d_model), jnp.float32)
    source_embedding = jax.random.normal(k2, (S, d_llm), jnp.float32)
    value_embedding = jax.random.normal(k3, (S, d_llm), jnp.float32)
    seq = jax.random.randint(k4, (B, L), 0, 5)   # only feeds saved_* side effects

    out = reprogramming_layer_forward(params, target_embedding, source_embedding,
                                      value_embedding, seq)
    out = jax.block_until_ready(out)

    ref = reference_forward(params, target_embedding, source_embedding,
                            value_embedding, seq)
    assert out.shape == (B, L, 64), out.shape
    # bf16 MXU operands (f32 accumulation, f32 softmax, exact reciprocal) give
    # ~1e-3-level absolute error vs the f32 reference at these magnitudes;
    # structural errors would be O(0.1+).
    err = float(jnp.max(jnp.abs(out - ref)))
    assert jnp.allclose(out, ref, atol=2e-2, rtol=2e-2), err
    print("KERNEL_OK")
</pallas_src>

<mosaic_0001>
module attributes {stable_mosaic.version = 11 : i64} {
  func.func @_reprogramming_kernel(%arg0: i32, %arg1: memref<16x32xf32, #tpu.memory_space<vmem>>, %arg2: memref<4x32x16xbf16, #tpu.memory_space<vmem>>, %arg3: memref<4x1x16xf32, #tpu.memory_space<vmem>>, %arg4: memref<4x16x64xbf16, #tpu.memory_space<vmem>>, %arg5: memref<1x64xf32, #tpu.memory_space<vmem>>, %arg6: memref<16x64xf32, #tpu.memory_space<vmem>>) attributes {dimension_semantics = [#tpu.dimension_semantics<parallel>], iteration_bounds = array<i64: 1>, scalar_prefetch = 0 : i64, scratch_operands = 0 : i64, tpu.core_type = #tpu.core_type<tc>, window_params = [{transform_indices = @transform_0, window_bounds = array<i64: 16, 32>}, {pipeline_mode = #tpu.pipeline_mode<synchronous>, transform_indices = @transform_1, window_bounds = array<i64: 4, 32, 16>}, {pipeline_mode = #tpu.pipeline_mode<synchronous>, transform_indices = @transform_2, window_bounds = array<i64: 4, 1, 16>}, {pipeline_mode = #tpu.pipeline_mode<synchronous>, transform_indices = @transform_3, window_bounds = array<i64: 4, 16, 64>}, {pipeline_mode = #tpu.pipeline_mode<synchronous>, transform_indices = @transform_4, window_bounds = array<i64: 1, 64>}, {transform_indices = @transform_5, window_bounds = array<i64: 16, 64>}]} {
    %c0 = arith.constant 0 : index
    %c0_0 = arith.constant 0 : index
    %0 = vector.load %arg1[%c0, %c0_0] : memref<16x32xf32, #tpu.memory_space<vmem>>, vector<16x32xf32>
    %1 = arith.truncf %0 : vector<16x32xf32> to vector<16x32xbf16>
    %cst = arith.constant 0.000000e+00 : f32
    %2 = vector.broadcast %cst : f32 to vector<16x64xf32>
    %c0_1 = arith.constant 0 : index
    %c0_2 = arith.constant 0 : index
    %c0_3 = arith.constant 0 : index
    %3 = vector.load %arg2[%c0_1, %c0_2, %c0_3] : memref<4x32x16xbf16, #tpu.memory_space<vmem>>, vector<1x32x16xbf16>
    %4 = vector.shape_cast %3 : vector<1x32x16xbf16> to vector<32x16xbf16>
    %cst_4 = arith.constant dense<0.000000e+00> : vector<16x16xf32>
    %5 = tpu.matmul %1, %4, %cst_4 {dimension_numbers = #tpu.dot_dimension_numbers<[1], [0], [0], [1], [0, 0, 1, 1], [], []>} : vector<16x32xbf16>, vector<32x16xbf16>, vector<16x16xf32> -> vector<16x16xf32>
    %c0_5 = arith.constant 0 : index
    %c0_6 = arith.constant 0 : index
    %c0_7 = arith.constant 0 : index
    %6 = vector.load %arg3[%c0_5, %c0_6, %c0_7] : memref<4x1x16xf32, #tpu.memory_space<vmem>>, vector<1x1x16xf32>
    %7 = vector.shape_cast %6 : vector<1x1x16xf32> to vector<1x16xf32>
    %8 = vector.broadcast %7 : vector<1x16xf32> to vector<16x16xf32>
    %9 = arith.addf %5, %8 : vector<16x16xf32>
    %cst_8 = arith.constant dense<0xFF800000> : vector<16xf32>
    %10 = vector.multi_reduction <maximumf>, %9, %cst_8 [1] : vector<16x16xf32> to vector<16xf32>
    %11 = vector.shape_cast %10 : vector<16xf32> to vector<16x1xf32>
    %12 = vector.broadcast %11 : vector<16x1xf32> to vector<16x16xf32>
    %13 = arith.subf %9, %12 : vector<16x16xf32>
    %14 = math.exp %13 : vector<16x16xf32>
    %cst_9 = arith.constant dense<0.000000e+00> : vector<16xf32>
    %15 = vector.multi_reduction <add>, %14, %cst_9 [1] : vector<16x16xf32> to vector<16xf32>
    %16 = vector.shape_cast %15 : vector<16xf32> to vector<16x1xf32>
    %17 = tpu.reciprocal %16 : vector<16x1xf32> -> vector<16x1xf32>
    %18 = arith.truncf %14 : vector<16x16xf32> to vector<16x16xbf16>
    %c0_10 = arith.constant 0 : index
    %c0_11 = arith.constant 0 : index
    %c0_12 = arith.constant 0 : index
    %19 = vector.load %arg4[%c0_10, %c0_11, %c0_12] : memref<4x16x64xbf16, #tpu.memory_space<vmem>>, vector<1x16x64xbf16>
    %20 = vector.shape_cast %19 : vector<1x16x64xbf16> to vector<16x64xbf16>
    %cst_13 = arith.constant dense<0.000000e+00> : vector<16x64xf32>
    %21 = tpu.matmul %18, %20, %cst_13 {dimension_numbers = #tpu.dot_dimension_numbers<[1], [0], [0], [1], [0, 0, 1, 1], [], []>} : vector<16x16xbf16>, vector<16x64xbf16>, vector<16x64xf32> -> vector<16x64xf32>
    %22 = vector.broadcast %17 : vector<16x1xf32> to vector<16x64xf32>
    %23 = arith.mulf %21, %22 : vector<16x64xf32>
    %24 = arith.addf %2, %23 : vector<16x64xf32>
    %c1 = arith.constant 1 : index
    %c0_14 = arith.constant 0 : index
    %c0_15 = arith.constant 0 : index
    %25 = vector.load %arg2[%c1, %c0_14, %c0_15] : memref<4x32x16xbf16, #tpu.memory_space<vmem>>, vector<1x32x16xbf16>
    %26 = vector.shape_cast %25 : vector<1x32x16xbf16> to vector<32x16xbf16>
    %cst_16 = arith.constant dense<0.000000e+00> : vector<16x16xf32>
    %27 = tpu.matmul %1, %26, %cst_16 {dimension_numbers = #tpu.dot_dimension_numbers<[1], [0], [0], [1], [0, 0, 1, 1], [], []>} : vector<16x32xbf16>, vector<32x16xbf16>, vector<16x16xf32> -> vector<16x16xf32>
    %c1_17 = arith.constant 1 : index
    %c0_18 = arith.constant 0 : index
    %c0_19 = arith.constant 0 : index
    %28 = vector.load %arg3[%c1_17, %c0_18, %c0_19] : memref<4x1x16xf32, #tpu.memory_space<vmem>>, vector<1x1x16xf32>
    %29 = vector.shape_cast %28 : vector<1x1x16xf32> to vector<1x16xf32>
    %30 = vector.broadcast %29 : vector<1x16xf32> to vector<16x16xf32>
    %31 = arith.addf %27, %30 : vector<16x16xf32>
    %cst_20 = arith.constant dense<0xFF800000> : vector<16xf32>
    %32 = vector.multi_reduction <maximumf>, %31, %cst_20 [1] : vector<16x16xf32> to vector<16xf32>
    %33 = vector.shape_cast %32 : vector<16xf32> to vector<16x1xf32>
    %34 = vector.broadcast %33 : vector<16x1xf32> to vector<16x16xf32>
    %35 = arith.subf %31, %34 : vector<16x16xf32>
    %36 = math.exp %35 : vector<16x16xf32>
    %cst_21 = arith.constant dense<0.000000e+00> : vector<16xf32>
    %37 = vector.multi_reduction <add>, %36, %cst_21 [1] : vector<16x16xf32> to vector<16xf32>
    %38 = vector.shape_cast %37 : vector<16xf32> to vector<16x1xf32>
    %39 = tpu.reciprocal %38 : vector<16x1xf32> -> vector<16x1xf32>
    %40 = arith.truncf %36 : vector<16x16xf32> to vector<16x16xbf16>
    %c1_22 = arith.constant 1 : index
    %c0_23 = arith.constant 0 : index
    %c0_24 = arith.constant 0 : index
    %41 = vector.load %arg4[%c1_22, %c0_23, %c0_24] : memref<4x16x64xbf16, #tpu.memory_space<vmem>>, vector<1x16x64xbf16>
    %42 = vector.shape_cast %41 : vector<1x16x64xbf16> to vector<16x64xbf16>
    %cst_25 = arith.constant dense<0.000000e+00> : vector<16x64xf32>
    %43 = tpu.matmul %40, %42, %cst_25 {dimension_numbers = #tpu.dot_dimension_numbers<[1], [0], [0], [1], [0, 0, 1, 1], [], []>} : vector<16x16xbf16>, vector<16x64xbf16>, vector<16x64xf32> -> vector<16x64xf32>
    %44 = vector.broadcast %39 : vector<16x1xf32> to vector<16x64xf32>
    %45 = arith.mulf %43, %44 : vector<16x64xf32>
    %46 = arith.addf %24, %45 : vector<16x64xf32>
    %c2 = arith.constant 2 : index
    %c0_26 = arith.constant 0 : index
    %c0_27 = arith.constant 0 : index
    %47 = vector.load %arg2[%c2, %c0_26, %c0_27] : memref<4x32x16xbf16, #tpu.memory_space<vmem>>, vector<1x32x16xbf16>
    %48 = vector.shape_cast %47 : vector<1x32x16xbf16> to vector<32x16xbf16>
    %cst_28 = arith.constant dense<0.000000e+00> : vector<16x16xf32>
    %49 = tpu.matmul %1, %48, %cst_28 {dimension_numbers = #tpu.dot_dimension_numbers<[1], [0], [0], [1], [0, 0, 1, 1], [], []>} : vector<16x32xbf16>, vector<32x16xbf16>, vector<16x16xf32> -> vector<16x16xf32>
    %c2_29 = arith.constant 2 : index
    %c0_30 = arith.constant 0 : index
    %c0_31 = arith.constant 0 : index
    %50 = vector.load %arg3[%c2_29, %c0_30, %c0_31] : memref<4x1x16xf32, #tpu.memory_space<vmem>>, vector<1x1x16xf32>
    %51 = vector.shape_cast %50 : vector<1x1x16xf32> to vector<1x16xf32>
    %52 = vector.broadcast %51 : vector<1x16xf32> to vector<16x16xf32>
    %53 = arith.addf %49, %52 : vector<16x16xf32>
    %cst_32 = arith.constant dense<0xFF800000> : vector<16xf32>
    %54 = vector.multi_reduction <maximumf>, %53, %cst_32 [1] : vector<16x16xf32> to vector<16xf32>
    %55 = vector.shape_cast %54 : vector<16xf32> to vector<16x1xf32>
    %56 = vector.broadcast %55 : vector<16x1xf32> to vector<16x16xf32>
    %57 = arith.subf %53, %56 : vector<16x16xf32>
    %58 = math.exp %57 : vector<16x16xf32>
    %cst_33 = arith.constant dense<0.000000e+00> : vector<16xf32>
    %59 = vector.multi_reduction <add>, %58, %cst_33 [1] : vector<16x16xf32> to vector<16xf32>
    %60 = vector.shape_cast %59 : vector<16xf32> to vector<16x1xf32>
    %61 = tpu.reciprocal %60 : vector<16x1xf32> -> vector<16x1xf32>
    %62 = arith.truncf %58 : vector<16x16xf32> to vector<16x16xbf16>
    %c2_34 = arith.constant 2 : index
    %c0_35 = arith.constant 0 : index
    %c0_36 = arith.constant 0 : index
    %63 = vector.load %arg4[%c2_34, %c0_35, %c0_36] : memref<4x16x64xbf16, #tpu.memory_space<vmem>>, vector<1x16x64xbf16>
    %64 = vector.shape_cast %63 : vector<1x16x64xbf16> to vector<16x64xbf16>
    %cst_37 = arith.constant dense<0.000000e+00> : vector<16x64xf32>
    %65 = tpu.matmul %62, %64, %cst_37 {dimension_numbers = #tpu.dot_dimension_numbers<[1], [0], [0], [1], [0, 0, 1, 1], [], []>} : vector<16x16xbf16>, vector<16x64xbf16>, vector<16x64xf32> -> vector<16x64xf32>
    %66 = vector.broadcast %61 : vector<16x1xf32> to vector<16x64xf32>
    %67 = arith.mulf %65, %66 : vector<16x64xf32>
    %68 = arith.addf %46, %67 : vector<16x64xf32>
    %c3 = arith.constant 3 : index
    %c0_38 = arith.constant 0 : index
    %c0_39 = arith.constant 0 : index
    %69 = vector.load %arg2[%c3, %c0_38, %c0_39] : memref<4x32x16xbf16, #tpu.memory_space<vmem>>, vector<1x32x16xbf16>
    %70 = vector.shape_cast %69 : vector<1x32x16xbf16> to vector<32x16xbf16>
    %cst_40 = arith.constant dense<0.000000e+00> : vector<16x16xf32>
    %71 = tpu.matmul %1, %70, %cst_40 {dimension_numbers = #tpu.dot_dimension_numbers<[1], [0], [0], [1], [0, 0, 1, 1], [], []>} : vector<16x32xbf16>, vector<32x16xbf16>, vector<16x16xf32> -> vector<16x16xf32>
    %c3_41 = arith.constant 3 : index
    %c0_42 = arith.constant 0 : index
    %c0_43 = arith.constant 0 : index
    %72 = vector.load %arg3[%c3_41, %c0_42, %c0_43] : memref<4x1x16xf32, #tpu.memory_space<vmem>>, vector<1x1x16xf32>
    %73 = vector.shape_cast %72 : vector<1x1x16xf32> to vector<1x16xf32>
    %74 = vector.broadcast %73 : vector<1x16xf32> to vector<16x16xf32>
    %75 = arith.addf %71, %74 : vector<16x16xf32>
    %cst_44 = arith.constant dense<0xFF800000> : vector<16xf32>
    %76 = vector.multi_reduction <maximumf>, %75, %cst_44 [1] : vector<16x16xf32> to vector<16xf32>
    %77 = vector.shape_cast %76 : vector<16xf32> to vector<16x1xf32>
    %78 = vector.broadcast %77 : vector<16x1xf32> to vector<16x16xf32>
    %79 = arith.subf %75, %78 : vector<16x16xf32>
    %80 = math.exp %79 : vector<16x16xf32>
    %cst_45 = arith.constant dense<0.000000e+00> : vector<16xf32>
    %81 = vector.multi_reduction <add>, %80, %cst_45 [1] : vector<16x16xf32> to vector<16xf32>
    %82 = vector.shape_cast %81 : vector<16xf32> to vector<16x1xf32>
    %83 = tpu.reciprocal %82 : vector<16x1xf32> -> vector<16x1xf32>
    %84 = arith.truncf %80 : vector<16x16xf32> to vector<16x16xbf16>
    %c3_46 = arith.constant 3 : index
    %c0_47 = arith.constant 0 : index
    %c0_48 = arith.constant 0 : index
    %85 = vector.load %arg4[%c3_46, %c0_47, %c0_48] : memref<4x16x64xbf16, #tpu.memory_space<vmem>>, vector<1x16x64xbf16>
    %86 = vector.shape_cast %85 : vector<1x16x64xbf16> to vector<16x64xbf16>
    %cst_49 = arith.constant dense<0.000000e+00> : vector<16x64xf32>
    %87 = tpu.matmul %84, %86, %cst_49 {dimension_numbers = #tpu.dot_dimension_numbers<[1], [0], [0], [1], [0, 0, 1, 1], [], []>} : vector<16x16xbf16>, vector<16x64xbf16>, vector<16x64xf32> -> vector<16x64xf32>
    %88 = vector.broadcast %83 : vector<16x1xf32> to vector<16x64xf32>
    %89 = arith.mulf %87, %88 : vector<16x64xf32>
    %90 = arith.addf %68, %89 : vector<16x64xf32>
    %c0_50 = arith.constant 0 : index
    %c0_51 = arith.constant 0 : index
    %91 = vector.load %arg5[%c0_50, %c0_51] : memref<1x64xf32, #tpu.memory_space<vmem>>, vector<1x64xf32>
    %92 = vector.broadcast %91 : vector<1x64xf32> to vector<16x64xf32>
    %93 = arith.addf %90, %92 : vector<16x64xf32>
    %c0_52 = arith.constant 0 : index
    %c0_53 = arith.constant 0 : index
    %94 = vector.load %arg6[%c0_52, %c0_53] : memref<16x64xf32, #tpu.memory_space<vmem>>, vector<16x64xf32>
    tpu.vector_store %arg6[%c0_52, %c0_53], %93 {strides = array<i32>} : memref<16x64xf32, #tpu.memory_space<vmem>>, vector<16x64xf32>,
    return
  }
  func.func @transform_0(%arg0: i32) -> (i32, i32) {
    %c0_i32 = arith.constant 0 : i32
    %c0_i32_0 = arith.constant 0 : i32
    return %arg0, %c0_i32 : i32, i32
  }
  func.func @transform_1(%arg0: i32) -> (i32, i32, i32) {
    %c0_i32 = arith.constant 0 : i32
    %c0_i32_0 = arith.constant 0 : i32
    %c0_i32_1 = arith.constant 0 : i32
    %c0_i32_2 = arith.constant 0 : i32
    return %c0_i32, %c0_i32_0, %c0_i32_1 : i32, i32, i32
  }
  func.func @transform_2(%arg0: i32) -> (i32, i32, i32) {
    %c0_i32 = arith.constant 0 : i32
    %c0_i32_0 = arith.constant 0 : i32
    %c0_i32_1 = arith.constant 0 : i32
    %c0_i32_2 = arith.constant 0 : i32
    return %c0_i32, %c0_i32_0, %c0_i32_1 : i32, i32, i32
  }
  func.func @transform_3(%arg0: i32) -> (i32, i32, i32) {
    %c0_i32 = arith.constant 0 : i32
    %c0_i32_0 = arith.constant 0 : i32
    %c0_i32_1 = arith.constant 0 : i32
    %c0_i32_2 = arith.constant 0 : i32
    return %c0_i32, %c0_i32_0, %c0_i32_1 : i32, i32, i32
  }
  func.func @transform_4(%arg0: i32) -> (i32, i32) {
    %c0_i32 = arith.constant 0 : i32
    %c0_i32_0 = arith.constant 0 : i32
    %c0_i32_1 = arith.constant 0 : i32
    return %c0_i32, %c0_i32_0 : i32, i32
  }
  func.func @transform_5(%arg0: i32) -> (i32, i32) {
    %c0_i32 = arith.constant 0 : i32
    %c0_i32_0 = arith.constant 0 : i32
    return %arg0, %c0_i32 : i32, i32
  }
}

module attributes {stable_mosaic.version = 11 : i64} {
  func.func @_reprogramming_kernel(%arg0: i32, %arg1: memref<16x32xf32, #tpu.memory_space<vmem>>, %arg2: memref<4x32x16xbf16, #tpu.memory_space<vmem>>, %arg3: memref<4x1x16xf32, #tpu.memory_space<vmem>>, %arg4: memref<4x16x64xbf16, #tpu.memory_space<vmem>>, %arg5: memref<1x64xf32, #tpu.memory_space<vmem>>, %arg6: memref<16x64xf32, #tpu.memory_space<vmem>>) attributes {dimension_semantics = [#tpu.dimension_semantics<parallel>], iteration_bounds = array<i64: 1>, scalar_prefetch = 0 : i64, scratch_operands = 0 : i64, tpu.core_type = #tpu.core_type<tc>, window_params = [{transform_indices = @transform_0, window_bounds = array<i64: 16, 32>}, {pipeline_mode = #tpu.pipeline_mode<synchronous>, transform_indices = @transform_1, window_bounds = array<i64: 4, 32, 16>}, {pipeline_mode = #tpu.pipeline_mode<synchronous>, transform_indices = @transform_2, window_bounds = array<i64: 4, 1, 16>}, {pipeline_mode = #tpu.pipeline_mode<synchronous>, transform_indices = @transform_3, window_bounds = array<i64: 4, 16, 64>}, {pipeline_mode = #tpu.pipeline_mode<synchronous>, transform_indices = @transform_4, window_bounds = array<i64: 1, 64>}, {transform_indices = @transform_5, window_bounds = array<i64: 16, 64>}]} {
    %c0 = arith.constant 0 : index
    %c0_0 = arith.constant 0 : index
    %0 = vector.load %arg1[%c0, %c0_0] : memref<16x32xf32, #tpu.memory_space<vmem>>, vector<16x32xf32>
    %1 = arith.truncf %0 : vector<16x32xf32> to vector<16x32xbf16>
    %cst = arith.constant 0.000000e+00 : f32
    %2 = vector.broadcast %cst : f32 to vector<16x64xf32>
    %c0_1 = arith.constant 0 : index
    %c0_2 = arith.constant 0 : index
    %c0_3 = arith.constant 0 : index
    %3 = vector.load %arg2[%c0_1, %c0_2, %c0_3] : memref<4x32x16xbf16, #tpu.memory_space<vmem>>, vector<1x32x16xbf16>
    %4 = vector.shape_cast %3 : vector<1x32x16xbf16> to vector<32x16xbf16>
    %cst_4 = arith.constant dense<0.000000e+00> : vector<16x16xf32>
    %5 = tpu.matmul %1, %4, %cst_4 {dimension_numbers = #tpu.dot_dimension_numbers<[1], [0], [0], [1], [0, 0, 1, 1], [], []>} : vector<16x32xbf16>, vector<32x16xbf16>, vector<16x16xf32> -> vector<16x16xf32>
    %c0_5 = arith.constant 0 : index
    %c0_6 = arith.constant 0 : index
    %c0_7 = arith.constant 0 : index
    %6 = vector.load %arg3[%c0_5, %c0_6, %c0_7] : memref<4x1x16xf32, #tpu.memory_space<vmem>>, vector<1x1x16xf32>
    %7 = vector.shape_cast %6 : vector<1x1x16xf32> to vector<1x16xf32>
    %8 = vector.broadcast %7 : vector<1x16xf32> to vector<16x16xf32>
    %9 = arith.addf %5, %8 : vector<16x16xf32>
    %cst_8 = arith.constant dense<0xFF800000> : vector<16xf32>
    %10 = vector.multi_reduction <maximumf>, %9, %cst_8 [1] : vector<16x16xf32> to vector<16xf32>
    %11 = vector.shape_cast %10 : vector<16xf32> to vector<16x1xf32>
    %12 = vector.broadcast %11 : vector<16x1xf32> to vector<16x16xf32>
    %13 = arith.subf %9, %12 : vector<16x16xf32>
    %14 = math.exp %13 : vector<16x16xf32>
    %cst_9 = arith.constant dense<0.000000e+00> : vector<16xf32>
    %15 = vector.multi_reduction <add>, %14, %cst_9 [1] : vector<16x16xf32> to vector<16xf32>
    %16 = vector.shape_cast %15 : vector<16xf32> to vector<16x1xf32>
    %17 = tpu.reciprocal %16 : vector<16x1xf32> -> vector<16x1xf32>
    %18 = arith.truncf %14 : vector<16x16xf32> to vector<16x16xbf16>
    %c0_10 = arith.constant 0 : index
    %c0_11 = arith.constant 0 : index
    %c0_12 = arith.constant 0 : index
    %19 = vector.load %arg4[%c0_10, %c0_11, %c0_12] : memref<4x16x64xbf16, #tpu.memory_space<vmem>>, vector<1x16x64xbf16>
    %20 = vector.shape_cast %19 : vector<1x16x64xbf16> to vector<16x64xbf16>
    %cst_13 = arith.constant dense<0.000000e+00> : vector<16x64xf32>
    %21 = tpu.matmul %18, %20, %cst_13 {dimension_numbers = #tpu.dot_dimension_numbers<[1], [0], [0], [1], [0, 0, 1, 1], [], []>} : vector<16x16xbf16>, vector<16x64xbf16>, vector<16x64xf32> -> vector<16x64xf32>
    %22 = vector.broadcast %17 : vector<16x1xf32> to vector<16x64xf32>
    %23 = arith.mulf %21, %22 : vector<16x64xf32>
    %24 = arith.addf %2, %23 : vector<16x64xf32>
    %c1 = arith.constant 1 : index
    %c0_14 = arith.constant 0 : index
    %c0_15 = arith.constant 0 : index
    %25 = vector.load %arg2[%c1, %c0_14, %c0_15] : memref<4x32x16xbf16, #tpu.memory_space<vmem>>, vector<1x32x16xbf16>
    %26 = vector.shape_cast %25 : vector<1x32x16xbf16> to vector<32x16xbf16>
    %cst_16 = arith.constant dense<0.000000e+00> : vector<16x16xf32>
    %27 = tpu.matmul %1, %26, %cst_16 {dimension_numbers = #tpu.dot_dimension_numbers<[1], [0], [0], [1], [0, 0, 1, 1], [], []>} : vector<16x32xbf16>, vector<32x16xbf16>, vector<16x16xf32> -> vector<16x16xf32>
    %c1_17 = arith.constant 1 : index
    %c0_18 = arith.constant 0 : index
    %c0_19 = arith.constant 0 : index
    %28 = vector.load %arg3[%c1_17, %c0_18, %c0_19] : memref<4x1x16xf32, #tpu.memory_space<vmem>>, vector<1x1x16xf32>
    %29 = vector.shape_cast %28 : vector<1x1x16xf32> to vector<1x16xf32>
    %30 = vector.broadcast %29 : vector<1x16xf32> to vector<16x16xf32>
    %31 = arith.addf %27, %30 : vector<16x16xf32>
    %cst_20 = arith.constant dense<0xFF800000> : vector<16xf32>
    %32 = vector.multi_reduction <maximumf>, %31, %cst_20 [1] : vector<16x16xf32> to vector<16xf32>
    %33 = vector.shape_cast %32 : vector<16xf32> to vector<16x1xf32>
    %34 = vector.broadcast %33 : vector<16x1xf32> to vector<16x16xf32>
    %35 = arith.subf %31, %34 : vector<16x16xf32>
    %36 = math.exp %35 : vector<16x16xf32>
    %cst_21 = arith.constant dense<0.000000e+00> : vector<16xf32>
    %37 = vector.multi_reduction <add>, %36, %cst_21 [1] : vector<16x16xf32> to vector<16xf32>
    %38 = vector.shape_cast %37 : vector<16xf32> to vector<16x1xf32>
    %39 = tpu.reciprocal %38 : vector<16x1xf32> -> vector<16x1xf32>
    %40 = arith.truncf %36 : vector<16x16xf32> to vector<16x16xbf16>
    %c1_22 = arith.constant 1 : index
    %c0_23 = arith.constant 0 : index
    %c0_24 = arith.constant 0 : index
    %41 = vector.load %arg4[%c1_22, %c0_23, %c0_24] : memref<4x16x64xbf16, #tpu.memory_space<vmem>>, vector<1x16x64xbf16>
    %42 = vector.shape_cast %41 : vector<1x16x64xbf16> to vector<16x64xbf16>
    %cst_25 = arith.constant dense<0.000000e+00> : vector<16x64xf32>
    %43 = tpu.matmul %40, %42, %cst_25 {dimension_numbers = #tpu.dot_dimension_numbers<[1], [0], [0], [1], [0, 0, 1, 1], [], []>} : vector<16x16xbf16>, vector<16x64xbf16>, vector<16x64xf32> -> vector<16x64xf32>
    %44 = vector.broadcast %39 : vector<16x1xf32> to vector<16x64xf32>
    %45 = arith.mulf %43, %44 : vector<16x64xf32>
    %46 = arith.addf %24, %45 : vector<16x64xf32>
    %c2 = arith.constant 2 : index
    %c0_26 = arith.constant 0 : index
    %c0_27 = arith.constant 0 : index
    %47 = vector.load %arg2[%c2, %c0_26, %c0_27] : memref<4x32x16xbf16, #tpu.memory_space<vmem>>, vector<1x32x16xbf16>
    %48 = vector.shape_cast %47 : vector<1x32x16xbf16> to vector<32x16xbf16>
    %cst_28 = arith.constant dense<0.000000e+00> : vector<16x16xf32>
    %49 = tpu.matmul %1, %48, %cst_28 {dimension_numbers = #tpu.dot_dimension_numbers<[1], [0], [0], [1], [0, 0, 1, 1], [], []>} : vector<16x32xbf16>, vector<32x16xbf16>, vector<16x16xf32> -> vector<16x16xf32>
    %c2_29 = arith.constant 2 : index
    %c0_30 = arith.constant 0 : index
    %c0_31 = arith.constant 0 : index
    %50 = vector.load %arg3[%c2_29, %c0_30, %c0_31] : memref<4x1x16xf32, #tpu.memory_space<vmem>>, vector<1x1x16xf32>
    %51 = vector.shape_cast %50 : vector<1x1x16xf32> to vector<1x16xf32>
    %52 = vector.broadcast %51 : vector<1x16xf32> to vector<16x16xf32>
    %53 = arith.addf %49, %52 : vector<16x16xf32>
    %cst_32 = arith.constant dense<0xFF800000> : vector<16xf32>
    %54 = vector.multi_reduction <maximumf>, %53, %cst_32 [1] : vector<16x16xf32> to vector<16xf32>
    %55 = vector.shape_cast %54 : vector<16xf32> to vector<16x1xf32>
    %56 = vector.broadcast %55 : vector<16x1xf32> to vector<16x16xf32>
    %57 = arith.subf %53, %56 : vector<16x16xf32>
    %58 = math.exp %57 : vector<16x16xf32>
    %cst_33 = arith.constant dense<0.000000e+00> : vector<16xf32>
    %59 = vector.multi_reduction <add>, %58, %cst_33 [1] : vector<16x16xf32> to vector<16xf32>
    %60 = vector.shape_cast %59 : vector<16xf32> to vector<16x1xf32>
    %61 = tpu.reciprocal %60 : vector<16x1xf32> -> vector<16x1xf32>
    %62 = arith.truncf %58 : vector<16x16xf32> to vector<16x16xbf16>
    %c2_34 = arith.constant 2 : index
    %c0_35 = arith.constant 0 : index
    %c0_36 = arith.constant 0 : index
    %63 = vector.load %arg4[%c2_34, %c0_35, %c0_36] : memref<4x16x64xbf16, #tpu.memory_space<vmem>>, vector<1x16x64xbf16>
    %64 = vector.shape_cast %63 : vector<1x16x64xbf16> to vector<16x64xbf16>
    %cst_37 = arith.constant dense<0.000000e+00> : vector<16x64xf32>
    %65 = tpu.matmul %62, %64, %cst_37 {dimension_numbers = #tpu.dot_dimension_numbers<[1], [0], [0], [1], [0, 0, 1, 1], [], []>} : vector<16x16xbf16>, vector<16x64xbf16>, vector<16x64xf32> -> vector<16x64xf32>
    %66 = vector.broadcast %61 : vector<16x1xf32> to vector<16x64xf32>
    %67 = arith.mulf %65, %66 : vector<16x64xf32>
    %68 = arith.addf %46, %67 : vector<16x64xf32>
    %c3 = arith.constant 3 : index
    %c0_38 = arith.constant 0 : index
    %c0_39 = arith.constant 0 : index
    %69 = vector.load %arg2[%c3, %c0_38, %c0_39] : memref<4x32x16xbf16, #tpu.memory_space<vmem>>, vector<1x32x16xbf16>
    %70 = vector.shape_cast %69 : vector<1x32x16xbf16> to vector<32x16xbf16>
    %cst_40 = arith.constant dense<0.000000e+00> : vector<16x16xf32>
    %71 = tpu.matmul %1, %70, %cst_40 {dimension_numbers = #tpu.dot_dimension_numbers<[1], [0], [0], [1], [0, 0, 1, 1], [], []>} : vector<16x32xbf16>, vector<32x16xbf16>, vector<16x16xf32> -> vector<16x16xf32>
    %c3_41 = arith.constant 3 : index
    %c0_42 = arith.constant 0 : index
    %c0_43 = arith.constant 0 : index
    %72 = vector.load %arg3[%c3_41, %c0_42, %c0_43] : memref<4x1x16xf32, #tpu.memory_space<vmem>>, vector<1x1x16xf32>
    %73 = vector.shape_cast %72 : vector<1x1x16xf32> to vector<1x16xf32>
    %74 = vector.broadcast %73 : vector<1x16xf32> to vector<16x16xf32>
    %75 = arith.addf %71, %74 : vector<16x16xf32>
    %cst_44 = arith.constant dense<0xFF800000> : vector<16xf32>
    %76 = vector.multi_reduction <maximumf>, %75, %cst_44 [1] : vector<16x16xf32> to vector<16xf32>
    %77 = vector.shape_cast %76 : vector<16xf32> to vector<16x1xf32>
    %78 = vector.broadcast %77 : vector<16x1xf32> to vector<16x16xf32>
    %79 = arith.subf %75, %78 : vector<16x16xf32>
    %80 = math.exp %79 : vector<16x16xf32>
    %cst_45 = arith.constant dense<0.000000e+00> : vector<16xf32>
    %81 = vector.multi_reduction <add>, %80, %cst_45 [1] : vector<16x16xf32> to vector<16xf32>
    %82 = vector.shape_cast %81 : vector<16xf32> to vector<16x1xf32>
    %83 = tpu.reciprocal %82 : vector<16x1xf32> -> vector<16x1xf32>
    %84 = arith.truncf %80 : vector<16x16xf32> to vector<16x16xbf16>
    %c3_46 = arith.constant 3 : index
    %c0_47 = arith.constant 0 : index
    %c0_48 = arith.constant 0 : index
    %85 = vector.load %arg4[%c3_46, %c0_47, %c0_48] : memref<4x16x64xbf16, #tpu.memory_space<vmem>>, vector<1x16x64xbf16>
    %86 = vector.shape_cast %85 : vector<1x16x64xbf16> to vector<16x64xbf16>
    %cst_49 = arith.constant dense<0.000000e+00> : vector<16x64xf32>
    %87 = tpu.matmul %84, %86, %cst_49 {dimension_numbers = #tpu.dot_dimension_numbers<[1], [0], [0], [1], [0, 0, 1, 1], [], []>} : vector<16x16xbf16>, vector<16x64xbf16>, vector<16x64xf32> -> vector<16x64xf32>
    %88 = vector.broadcast %83 : vector<16x1xf32> to vector<16x64xf32>
    %89 = arith.mulf %87, %88 : vector<16x64xf32>
    %90 = arith.addf %68, %89 : vector<16x64xf32>
    %c0_50 = arith.constant 0 : index
    %c0_51 = arith.constant 0 : index
    %91 = vector.load %arg5[%c0_50, %c0_51] : memref<1x64xf32, #tpu.memory_space<vmem>>, vector<1x64xf32>
    %92 = vector.broadcast %91 : vector<1x64xf32> to vector<16x64xf32>
    %93 = arith.addf %90, %92 : vector<16x64xf32>
    %c0_52 = arith.constant 0 : index
    %c0_53 = arith.constant 0 : index
    %94 = vector.load %arg6[%c0_52, %c0_53] : memref<16x64xf32, #tpu.memory_space<vmem>>, vector<16x64xf32>
    tpu.vector_store %arg6[%c0_52, %c0_53], %93 {strides = array<i32>} : memref<16x64xf32, #tpu.memory_space<vmem>>, vector<16x64xf32>,
    return
  }
  func.func @transform_0(%arg0: i32) -> (i32, i32) {
    %c0_i32 = arith.constant 0 : i32
    %c0_i32_0 = arith.constant 0 : i32
    return %arg0, %c0_i32 : i32, i32
  }
  func.func @transform_1(%arg0: i32) -> (i32, i32, i32) {
    %c0_i32 = arith.constant 0 : i32
    %c0_i32_0 = arith.constant 0 : i32
    %c0_i32_1 = arith.constant 0 : i32
    %c0_i32_2 = arith.constant 0 : i32
    return %c0_i32, %c0_i32_0, %c0_i32_1 : i32, i32, i32
  }
  func.func @transform_2(%arg0: i32) -> (i32, i32, i32) {
    %c0_i32 = arith.constant 0 : i32
    %c0_i32_0 = arith.constant 0 : i32
    %c0_i32_1 = arith.constant 0 : i32
    %c0_i32_2 = arith.constant 0 : i32
    return %c0_i32, %c0_i32_0, %c0_i32_1 : i32, i32, i32
  }
  func.func @transform_3(%arg0: i32) -> (i32, i32, i32) {
    %c0_i32 = arith.constant 0 : i32
    %c0_i32_0 = arith.constant 0 : i32
    %c0_i32_1 = arith.constant 0 : i32
    %c0_i32_2 = arith.constant 0 : i32
    return %c0_i32, %c0_i32_0, %c0_i32_1 : i32, i32, i32
  }
  func.func @transform_4(%arg0: i32) -> (i32, i32) {
    %c0_i32 = arith.constant 0 : i32
    %c0_i32_0 = arith.constant 0 : i32
    %c0_i32_1 = arith.constant 0 : i32
    return %c0_i32, %c0_i32_0 : i32, i32
  }
  func.func @transform_5(%arg0: i32) -> (i32, i32) {
    %c0_i32 = arith.constant 0 : i32
    %c0_i32_0 = arith.constant 0 : i32
    return %arg0, %c0_i32 : i32, i32
  }
}

</mosaic_0001>

<llo_original>
// kernel: tpu_custom_call.1
$region0: #{tpu_custom_call.1}
  #allocation0 [shape = 'u32[]', space=smem, size = 0x4, offset = 0x4, fixed_abs, tag = 'smem constant byte address 0x4 - core index']
  #allocation1 [shape = 'u32[144,128]{1,0:T(1,128)}', space=vmem, size = 0x12000, scoped, tag = 'internal scratch']
  %s0 = inlined_call_operand.vmem [shape: f32[16,32], index: 0, kind: input, shape index: {}]
  %s1 = inlined_call_operand.vmem [shape: bf16[4,32,16], index: 1, kind: input, shape index: {}]
  %s2 = inlined_call_operand.vmem [shape: f32[4,1,16], index: 2, kind: input, shape index: {}]
  %s3 = inlined_call_operand.vmem [shape: bf16[4,16,64], index: 3, kind: input, shape index: {}]
  %s4 = inlined_call_operand.vmem [shape: f32[1,64], index: 4, kind: input, shape index: {}]
  %s5 = inlined_call_operand.hbm [shape: f32[16,64], index: 5, kind: output, shape index: {}]
  %s6 = sld [smem:[#allocation0]]
  $region30: #{tpu_custom_call.1} parent=0
    _
  %s8 = ssub.s32 1, %s6
  %s9 = scalar_select 0, %s8, %s6
  $region1: #{tpu_custom_call.1} parent=0
    #allocation2 [shape = 'u8[8192]{0}', space=vmem, size = 0x2000, scoped, tag = 'output window, operand 0, single buffered']
    #allocation3 [shape = 's32[1]{0}', space=sflag, size = 0x4, scoped, tag = 'scoped memory for tpu_custom_call.1']
    %10 = vsyncpa [#allocation3], 0
    // Predicated region
    $region2: #{tpu_custom_call.1} parent=1 // pred_check
      _
    $region3: #{tpu_custom_call.1} parent=1 // pred_check_branch
      %12 = sbr.rel (0) target = $region5
    $region4: #{tpu_custom_call.1} parent=1 // pred_region
      _
    $region5: #{tpu_custom_call.1} parent=1 // pred_fallthru
      _
    // Predicated region
    $region6: #{tpu_custom_call.1} parent=1 // pred_check
      _
    $region7: #{tpu_custom_call.1} parent=1 // pred_check_branch
      %14 = sbr.rel (0) target = $region9
    $region8: #{tpu_custom_call.1} parent=1 // pred_region
      _
    $region9: #{tpu_custom_call.1} parent=1 // pred_fallthru
      _
    // Predicated region
    $region10: #{tpu_custom_call.1} parent=1 // pred_check
      _
    $region11: #{tpu_custom_call.1} parent=1 // pred_check_branch
      %16 = sbr.rel (0) target = $region13
    $region12: #{tpu_custom_call.1} parent=1 // pred_region
      _
    $region13: #{tpu_custom_call.1} parent=1 // pred_fallthru
      _
    // Predicated region
    $region14: #{tpu_custom_call.1} parent=1 // pred_check
      _
    $region15: #{tpu_custom_call.1} parent=1 // pred_check_branch
      %18 = sbr.rel (0) target = $region17
    $region16: #{tpu_custom_call.1} parent=1 // pred_region
      _
    $region17: #{tpu_custom_call.1} parent=1 // pred_fallthru
      _
    // Predicated region
    $region18: #{tpu_custom_call.1} parent=1 // pred_check
      _
    $region19: #{tpu_custom_call.1} parent=1 // pred_check_branch
      %20 = sbr.rel (0) target = $region21
    $region20: #{tpu_custom_call.1} parent=1 // pred_region
      _
    $region21: #{tpu_custom_call.1} parent=1 // pred_fallthru
      _
    %v22 = vld [vmem:[%s0] sm:$0xff]
    %v23 = vld [vmem:[%s0 + $0x8] sm:$0xff]
    %v24 = vpack.c.bf16 %v23, %v22
    %v25 = vld [vmem:[%s1] sm:$0xf]
    %v26 = vld [vmem:[%s1 + $0x4] sm:$0xf]
    %v27 = vld [vmem:[%s1 + $0x8] sm:$0xf]
    %v28 = vld [vmem:[%s1 + $0xc] sm:$0xf]
    %v29 = vld [vmem:[%s2] sm:$0x1]
    %v31 = vlaneseq
    %v32 = vshrl.u32 %v31, 7
    %v33 = vsub.s32 0, %v32
    %v34 = vrot.slane %v29, %v33
    %v40 = vunpack.c.l.b16 %v25
    %v41 = vunpack.c.l.b16 %v26
    %v42 = vunpack.c.l.b16 %v27
    %v43 = vunpack.c.l.b16 %v28
    %v44 = vpack.c.b16 %v41, %v40
    %v45 = vpack.c.b16 %v43, %v42
    %vm48 = vcmask 261120
    %v50 = vsel %vm48, %v24, 0
    %52 = vmatprep.subr.bf16.mxu0 0
    %53 = vmatpush1.bf16.msra.mxu0 0
    %54 = vmatprep.subr.bf16.mxu0 0
    %55 = vmatpush1.bf16.msra.mxu0 0
    %56 = vmatprep.subr.bf16.mxu0 0
    %57 = vmatpush1.bf16.msra.mxu0 0
    %58 = vmatprep.subr.bf16.mxu0 0
    %59 = vmatpush1.bf16.msra.mxu0 0
    %60 = vmatprep.subr.bf16.mxu0 0
    %61 = vmatpush1.bf16.msra.mxu0 0
    %62 = vmatprep.subr.bf16.mxu0 0
    %63 = vmatpush1.bf16.msra.mxu0 0
    %64 = vmatprep.subr.bf16.mxu0 0
    %65 = vmatpush1.bf16.msra.mxu0 %v45
    %66 = vmatprep.subr.bf16.mxu0 0
    %67 = vmatpush1.bf16.msra.mxu0 %v44
    %68 = vmatprep.subr.bf16.mxu0 0
    %69 = vmatpush2.bf16.msra.mxu0 0
    %70 = vmatprep.subr.bf16.mxu0 0
    %71 = vmatpush2.bf16.msra.mxu0 0
    %72 = vmatprep.subr.bf16.mxu0 0
    %73 = vmatpush2.bf16.msra.mxu0 0
    %74 = vmatprep.subr.bf16.mxu0 0
    %75 = vmatpush2.bf16.msra.mxu0 0
    %76 = vmatprep.subr.bf16.mxu0 0
    %77 = vmatpush2.bf16.msra.mxu0 0
    %78 = vmatprep.subr.bf16.mxu0 0
    %79 = vmatpush2.bf16.msra.mxu0 0
    %80 = vmatprep.subr.bf16.mxu0 0
    %81 = vmatpush2.bf16.msra.mxu0 0
    %82 = vmatprep.subr.bf16.mxu0 0
    %83 = vmatpush2.bf16.msra.mxu0 0
    %84 = vmatprep.mubr.bf16.mxu0 0
    %85 = vmatmul.mubr.bf16.gmra.mxu0 %v50
    %v86 = vpop.f32.mrf.mxu0
    %v87 = vadd.f32 %v34, %v86
    %v88 = vpop.f32.mrf.mxu0
    %v89 = vpop.f32.mrf.mxu0
    %v90 = vadd.f32 %v34, %v89
    %v91 = vpop.f32.mrf.mxu0
    %92 = vdwg.mxu0
    %vm93 = vcmask 130048
    %v94 = vsel %vm93, %v87, -inf
    %95 = vmax.xlane.f32.xlu0 %v94
    %v96 = vpop.xlane.xlu0 %95
    %v97 = vsel %vm93, %v90, -inf
    %98 = vmax.xlane.f32.xlu0 %v97
    %v99 = vpop.xlane.xlu0 %98
    %v100 = vsub.f32 %v87, %v96
    %v101 = vsub.f32 %v90, %v99
    %v102 = vmul.f32 %v100, 1.442695
    %v103 = vpow.pop %v102
    %v104 = vmul.f32 %v101, 1.442695
    %v105 = vpow.pop %v104
    %v106 = vsel %vm93, %v103, 0.0
    %107 = vadd.xlane.f32.xlu0 %v106
    %v108 = vpop.xlane.xlu0 %107
    %v109 = vsel %vm93, %v105, 0.0
    %110 = vadd.xlane.f32.xlu0 %v109
    %v111 = vpop.xlane.xlu0 %110
    %v112 = vrcp.pop %v108
    %v113 = vrcp.pop %v111
    %v114 = vpack.c.bf16 %v105, %v103
    %v115 = vld [vmem:[%s3] sm:$0xf]
    %v116 = vld [vmem:[%s3 + $0x4] sm:$0xf]
    %v119 = vunpack.c.l.b16 %v115
    %v120 = vunpack.c.l.b16 %v116
    %v121 = vpack.c.b16 %v120, %v119
    %v124 = vsel %vm93, %v114, 0
    %126 = vmatprep.subr.bf16.mxu0 0
    %127 = vmatpush1.bf16.msra.mxu0 0
    %128 = vmatprep.subr.bf16.mxu0 0
    %129 = vmatpush1.bf16.msra.mxu0 0
    %130 = vmatprep.subr.bf16.mxu0 0
    %131 = vmatpush1.bf16.msra.mxu0 0
    %132 = vmatprep.subr.bf16.mxu0 0
    %133 = vmatpush1.bf16.msra.mxu0 0
    %134 = vmatprep.subr.bf16.mxu0 0
    %135 = vmatpush1.bf16.msra.mxu0 0
    %136 = vmatprep.subr.bf16.mxu0 0
    %137 = vmatpush1.bf16.msra.mxu0 0
    %138 = vmatprep.subr.bf16.mxu0 0
    %139 = vmatpush1.bf16.msra.mxu0 0
    %140 = vmatprep.subr.bf16.mxu0 0
    %141 = vmatpush1.bf16.msra.mxu0 %v121
    %142 = vmatprep.subr.bf16.mxu0 0
    %143 = vmatpush2.bf16.msra.mxu0 0
    %144 = vmatprep.subr.bf16.mxu0 0
    %145 = vmatpush2.bf16.msra.mxu0 0
    %146 = vmatprep.subr.bf16.mxu0 0
    %147 = vmatpush2.bf16.msra.mxu0 0
    %148 = vmatprep.subr.bf16.mxu0 0
    %149 = vmatpush2.bf16.msra.mxu0 0
    %150 = vmatprep.subr.bf16.mxu0 0
    %151 = vmatpush2.bf16.msra.mxu0 0
    %152 = vmatprep.subr.bf16.mxu0 0
    %153 = vmatpush2.bf16.msra.mxu0 0
    %154 = vmatprep.subr.bf16.mxu0 0
    %155 = vmatpush2.bf16.msra.mxu0 0
    %156 = vmatprep.subr.bf16.mxu0 0
    %157 = vmatpush2.bf16.msra.mxu0 0
    %158 = vmatprep.mubr.bf16.mxu0 0
    %159 = vmatmul.mubr.bf16.gmra.mxu0 %v124
    %v160 = vpop.f32.mrf.mxu0
    %v161 = vadd.f32 0.0, %v160
    %v162 = vpop.f32.mrf.mxu0
    %v163 = vpop.f32.mrf.mxu0
    %v164 = vadd.f32 0.0, %v163
    %v165 = vpop.f32.mrf.mxu0
    %166 = vdwg.mxu0
    %v167 = vmul.f32 %v161, %v112
    %v168 = vmul.f32 %v164, %v113
    %v169 = vadd.f32 %v167, 0.0
    %v170 = vadd.f32 %v168, 0.0
    %s171 = scalar_lea.vmem %s1, 16
    %v172 = vld [vmem:[%s171] sm:$0xf]
    %v173 = vld [vmem:[%s171 + $0x4] sm:$0xf]
    %v174 = vld [vmem:[%s171 + $0x8] sm:$0xf]
    %v175 = vld [vmem:[%s171 + $0xc] sm:$0xf]
    %s176 = scalar_lea.vmem %s2, 1
    %v177 = vld [vmem:[%s176] sm:$0x1]
    %v179 = vlaneseq
    %v180 = vshrl.u32 %v179, 7
    %v181 = vsub.s32 0, %v180
    %v182 = vrot.slane %v177, %v181
    %v188 = vunpack.c.l.b16 %v172
    %v189 = vunpack.c.l.b16 %v173
    %v190 = vunpack.c.l.b16 %v174
    %v191 = vunpack.c.l.b16 %v175
    %v192 = vpack.c.b16 %v189, %v188
    %v193 = vpack.c.b16 %v191, %v190
    %196 = vmatprep.subr.bf16.mxu0 0
    %197 = vmatpush1.bf16.msra.mxu0 0
    %198 = vmatprep.subr.bf16.mxu0 0
    %199 = vmatpush1.bf16.msra.mxu0 0
    %200 = vmatprep.subr.bf16.mxu0 0
    %201 = vmatpush1.bf16.msra.mxu0 0
    %202 = vmatprep.subr.bf16.mxu0 0
    %203 = vmatpush1.bf16.msra.mxu0 0
    %204 = vmatprep.subr.bf16.mxu0 0
    %205 = vmatpush1.bf16.msra.mxu0 0
    %206 = vmatprep.subr.bf16.mxu0 0
    %207 = vmatpush1.bf16.msra.mxu0 0
    %208 = vmatprep.subr.bf16.mxu0 0
    %209 = vmatpush1.bf16.msra.mxu0 %v193
    %210 = vmatprep.subr.bf16.mxu0 0
    %211 = vmatpush1.bf16.msra.mxu0 %v192
    %212 = vmatprep.subr.bf16.mxu0 0
    %213 = vmatpush2.bf16.msra.mxu0 0
    %214 = vmatprep.subr.bf16.mxu0 0
    %215 = vmatpush2.bf16.msra.mxu0 0
    %216 = vmatprep.subr.bf16.mxu0 0
    %217 = vmatpush2.bf16.msra.mxu0 0
    %218 = vmatprep.subr.bf16.mxu0 0
    %219 = vmatpush2.bf16.msra.mxu0 0
    %220 = vmatprep.subr.bf16.mxu0 0
    %221 = vmatpush2.bf16.msra.mxu0 0
    %222 = vmatprep.subr.bf16.mxu0 0
    %223 = vmatpush2.bf16.msra.mxu0 0
    %224 = vmatprep.subr.bf16.mxu0 0
    %225 = vmatpush2.bf16.msra.mxu0 0
    %226 = vmatprep.subr.bf16.mxu0 0
    %227 = vmatpush2.bf16.msra.mxu0 0
    %228 = vmatprep.mubr.bf16.mxu0 0
    %229 = vmatmul.mubr.bf16.gmra.mxu0 %v50
    %v230 = vpop.f32.mrf.mxu0
    %v231 = vadd.f32 %v182, %v230
    %v232 = vpop.f32.mrf.mxu0
    %v233 = vpop.f32.mrf.mxu0
    %v234 = vadd.f32 %v182, %v233
    %v235 = vpop.f32.mrf.mxu0
    %236 = vdwg.mxu0
    %v237 = vsel %vm93, %v231, -inf
    %238 = vmax.xlane.f32.xlu0 %v237
    %v239 = vpop.xlane.xlu0 %238
    %v240 = vsel %vm93, %v234, -inf
    %241 = vmax.xlane.f32.xlu0 %v240
    %v242 = vpop.xlane.xlu0 %241
    %v243 = vsub.f32 %v231, %v239
    %v244 = vsub.f32 %v234, %v242
    %v245 = vmul.f32 %v243, 1.442695
    %v246 = vpow.pop %v245
    %v247 = vmul.f32 %v244, 1.442695
    %v248 = vpow.pop %v247
    %v249 = vsel %vm93, %v246, 0.0
    %250 = vadd.xlane.f32.xlu0 %v249
    %v251 = vpop.xlane.xlu0 %250
    %v252 = vsel %vm93, %v248, 0.0
    %253 = vadd.xlane.f32.xlu0 %v252
    %v254 = vpop.xlane.xlu0 %253
    %v255 = vrcp.pop %v251
    %v256 = vrcp.pop %v254
    %v257 = vpack.c.bf16 %v248, %v246
    %s258 = scalar_lea.vmem %s3, 8
    %v259 = vld [vmem:[%s258] sm:$0xf]
    %v260 = vld [vmem:[%s258 + $0x4] sm:$0xf]
    %v263 = vunpack.c.l.b16 %v259
    %v264 = vunpack.c.l.b16 %v260
    %v265 = vpack.c.b16 %v264, %v263
    %v268 = vsel %vm93, %v257, 0
    %270 = vmatprep.subr.bf16.mxu0 0
    %271 = vmatpush1.bf16.msra.mxu0 0
    %272 = vmatprep.subr.bf16.mxu0 0
    %273 = vmatpush1.bf16.msra.mxu0 0
    %274 = vmatprep.subr.bf16.mxu0 0
    %275 = vmatpush1.bf16.msra.mxu0 0
    %276 = vmatprep.subr.bf16.mxu0 0
    %277 = vmatpush1.bf16.msra.mxu0 0
    %278 = vmatprep.subr.bf16.mxu0 0
    %279 = vmatpush1.bf16.msra.mxu0 0
    %280 = vmatprep.subr.bf16.mxu0 0
    %281 = vmatpush1.bf16.msra.mxu0 0
    %282 = vmatprep.subr.bf16.mxu0 0
    %283 = vmatpush1.bf16.msra.mxu0 0
    %284 = vmatprep.subr.bf16.mxu0 0
    %285 = vmatpush1.bf16.msra.mxu0 %v265
    %286 = vmatprep.subr.bf16.mxu0 0
    %287 = vmatpush2.bf16.msra.mxu0 0
    %288 = vmatprep.subr.bf16.mxu0 0
    %289 = vmatpush2.bf16.msra.mxu0 0
    %290 = vmatprep.subr.bf16.mxu0 0
    %291 = vmatpush2.bf16.msra.mxu0 0
    %292 = vmatprep.subr.bf16.mxu0 0
    %293 = vmatpush2.bf16.msra.mxu0 0
    %294 = vmatprep.subr.bf16.mxu0 0
    %295 = vmatpush2.bf16.msra.mxu0 0
    %296 = vmatprep.subr.bf16.mxu0 0
    %297 = vmatpush2.bf16.msra.mxu0 0
    %298 = vmatprep.subr.bf16.mxu0 0
    %299 = vmatpush2.bf16.msra.mxu0 0
    %300 = vmatprep.subr.bf16.mxu0 0
    %301 = vmatpush2.bf16.msra.mxu0 0
    %302 = vmatprep.mubr.bf16.mxu0 0
    %303 = vmatmul.mubr.bf16.gmra.mxu0 %v268
    %v304 = vpop.f32.mrf.mxu0
    %v305 = vadd.f32 0.0, %v304
    %v306 = vpop.f32.mrf.mxu0
    %v307 = vpop.f32.mrf.mxu0
    %v308 = vadd.f32 0.0, %v307
    %v309 = vpop.f32.mrf.mxu0
    %310 = vdwg.mxu0
    %v311 = vmul.f32 %v305, %v255
    %v312 = vmul.f32 %v308, %v256
    %v313 = vadd.f32 %v169, %v311
    %v314 = vadd.f32 %v170, %v312
    %s315 = scalar_lea.vmem %s1, 32
    %v316 = vld [vmem:[%s315] sm:$0xf]
    %v317 = vld [vmem:[%s315 + $0x4] sm:$0xf]
    %v318 = vld [vmem:[%s315 + $0x8] sm:$0xf]
    %v319 = vld [vmem:[%s315 + $0xc] sm:$0xf]
    %s320 = scalar_lea.vmem %s2, 2
    %v321 = vld [vmem:[%s320] sm:$0x1]
    %v323 = vlaneseq
    %v324 = vshrl.u32 %v323, 7
    %v325 = vsub.s32 0, %v324
    %v326 = vrot.slane %v321, %v325
    %v332 = vunpack.c.l.b16 %v316
    %v333 = vunpack.c.l.b16 %v317
    %v334 = vunpack.c.l.b16 %v318
    %v335 = vunpack.c.l.b16 %v319
    %v336 = vpack.c.b16 %v333, %v332
    %v337 = vpack.c.b16 %v335, %v334
    %340 = vmatprep.subr.bf16.mxu0 0
    %341 = vmatpush1.bf16.msra.mxu0 0
    %342 = vmatprep.subr.bf16.mxu0 0
    %343 = vmatpush1.bf16.msra.mxu0 0
    %344 = vmatprep.subr.bf16.mxu0 0
    %345 = vmatpush1.bf16.msra.mxu0 0
    %346 = vmatprep.subr.bf16.mxu0 0
    %347 = vmatpush1.bf16.msra.mxu0 0
    %348 = vmatprep.subr.bf16.mxu0 0
    %349 = vmatpush1.bf16.msra.mxu0 0
    %350 = vmatprep.subr.bf16.mxu0 0
    %351 = vmatpush1.bf16.msra.mxu0 0
    %352 = vmatprep.subr.bf16.mxu0 0
    %353 = vmatpush1.bf16.msra.mxu0 %v337
    %354 = vmatprep.subr.bf16.mxu0 0
    %355 = vmatpush1.bf16.msra.mxu0 %v336
    %356 = vmatprep.subr.bf16.mxu0 0
    %357 = vmatpush2.bf16.msra.mxu0 0
    %358 = vmatprep.subr.bf16.mxu0 0
    %359 = vmatpush2.bf16.msra.mxu0 0
    %360 = vmatprep.subr.bf16.mxu0 0
    %361 = vmatpush2.bf16.msra.mxu0 0
    %362 = vmatprep.subr.bf16.mxu0 0
    %363 = vmatpush2.bf16.msra.mxu0 0
    %364 = vmatprep.subr.bf16.mxu0 0
    %365 = vmatpush2.bf16.msra.mxu0 0
    %366 = vmatprep.subr.bf16.mxu0 0
    %367 = vmatpush2.bf16.msra.mxu0 0
    %368 = vmatprep.subr.bf16.mxu0 0
    %369 = vmatpush2.bf16.msra.mxu0 0
    %370 = vmatprep.subr.bf16.mxu0 0
    %371 = vmatpush2.bf16.msra.mxu0 0
    %372 = vmatprep.mubr.bf16.mxu0 0
    %373 = vmatmul.mubr.bf16.gmra.mxu0 %v50
    %v374 = vpop.f32.mrf.mxu0
    %v375 = vadd.f32 %v326, %v374
    %v376 = vpop.f32.mrf.mxu0
    %v377 = vpop.f32.mrf.mxu0
    %v378 = vadd.f32 %v326, %v377
    %v379 = vpop.f32.mrf.mxu0
    %380 = vdwg.mxu0
    %v381 = vsel %vm93, %v375, -inf
    %382 = vmax.xlane.f32.xlu0 %v381
    %v383 = vpop.xlane.xlu0 %382
    %v384 = vsel %vm93, %v378, -inf
    %385 = vmax.xlane.f32.xlu0 %v384
    %v386 = vpop.xlane.xlu0 %385
    %v387 = vsub.f32 %v375, %v383
    %v388 = vsub.f32 %v378, %v386
    %v389 = vmul.f32 %v387, 1.442695
    %v390 = vpow.pop %v389
    %v391 = vmul.f32 %v388, 1.442695
    %v392 = vpow.pop %v391
    %v393 = vsel %vm93, %v390, 0.0
    %394 = vadd.xlane.f32.xlu0 %v393
    %v395 = vpop.xlane.xlu0 %394
    %v396 = vsel %vm93, %v392, 0.0
    %397 = vadd.xlane.f32.xlu0 %v396
    %v398 = vpop.xlane.xlu0 %397
    %v399 = vrcp.pop %v395
    %v400 = vrcp.pop %v398
    %v401 = vpack.c.bf16 %v392, %v390
    %s402 = scalar_lea.vmem %s3, 16
    %v403 = vld [vmem:[%s402] sm:$0xf]
    %v404 = vld [vmem:[%s402 + $0x4] sm:$0xf]
    %v407 = vunpack.c.l.b16 %v403
    %v408 = vunpack.c.l.b16 %v404
    %v409 = vpack.c.b16 %v408, %v407
    %v412 = vsel %vm93, %v401, 0
    %414 = vmatprep.subr.bf16.mxu0 0
    %415 = vmatpush1.bf16.msra.mxu0 0
    %416 = vmatprep.subr.bf16.mxu0 0
    %417 = vmatpush1.bf16.msra.mxu0 0
    %418 = vmatprep.subr.bf16.mxu0 0
    %419 = vmatpush1.bf16.msra.mxu0 0
    %420 = vmatprep.subr.bf16.mxu0 0
    %421 = vmatpush1.bf16.msra.mxu0 0
    %422 = vmatprep.subr.bf16.mxu0 0
    %423 = vmatpush1.bf16.msra.mxu0 0
    %424 = vmatprep.subr.bf16.mxu0 0
    %425 = vmatpush1.bf16.msra.mxu0 0
    %426 = vmatprep.subr.bf16.mxu0 0
    %427 = vmatpush1.bf16.msra.mxu0 0
    %428 = vmatprep.subr.bf16.mxu0 0
    %429 = vmatpush1.bf16.msra.mxu0 %v409
    %430 = vmatprep.subr.bf16.mxu0 0
    %431 = vmatpush2.bf16.msra.mxu0 0
    %432 = vmatprep.subr.bf16.mxu0 0
    %433 = vmatpush2.bf16.msra.mxu0 0
    %434 = vmatprep.subr.bf16.mxu0 0
    %435 = vmatpush2.bf16.msra.mxu0 0
    %436 = vmatprep.subr.bf16.mxu0 0
    %437 = vmatpush2.bf16.msra.mxu0 0
    %438 = vmatprep.subr.bf16.mxu0 0
    %439 = vmatpush2.bf16.msra.mxu0 0
    %440 = vmatprep.subr.bf16.mxu0 0
    %441 = vmatpush2.bf16.msra.mxu0 0
    %442 = vmatprep.subr.bf16.mxu0 0
    %443 = vmatpush2.bf16.msra.mxu0 0
    %444 = vmatprep.subr.bf16.mxu0 0
    %445 = vmatpush2.bf16.msra.mxu0 0
    %446 = vmatprep.mubr.bf16.mxu0 0
    %447 = vmatmul.mubr.bf16.gmra.mxu0 %v412
    %v448 = vpop.f32.mrf.mxu0
    %v449 = vadd.f32 0.0, %v448
    %v450 = vpop.f32.mrf.mxu0
    %v451 = vpop.f32.mrf.mxu0
    %v452 = vadd.f32 0.0, %v451
    %v453 = vpop.f32.mrf.mxu0
    %454 = vdwg.mxu0
    %v455 = vmul.f32 %v449, %v399
    %v456 = vmul.f32 %v452, %v400
    %v457 = vadd.f32 %v313, %v455
    %v458 = vadd.f32 %v314, %v456
    %s459 = scalar_lea.vmem %s1, 48
    %v460 = vld [vmem:[%s459] sm:$0xf]
    %v461 = vld [vmem:[%s459 + $0x4] sm:$0xf]
    %v462 = vld [vmem:[%s459 + $0x8] sm:$0xf]
    %v463 = vld [vmem:[%s459 + $0xc] sm:$0xf]
    %s464 = scalar_lea.vmem %s2, 3
    %v465 = vld [vmem:[%s464] sm:$0x1]
    %v467 = vlaneseq
    %v468 = vshrl.u32 %v467, 7
    %v469 = vsub.s32 0, %v468
    %v470 = vrot.slane %v465, %v469
    %v476 = vunpack.c.l.b16 %v460
    %v477 = vunpack.c.l.b16 %v461
    %v478 = vunpack.c.l.b16 %v462
    %v479 = vunpack.c.l.b16 %v463
    %v480 = vpack.c.b16 %v477, %v476
    %v481 = vpack.c.b16 %v479, %v478
    %484 = vmatprep.subr.bf16.mxu0 0
    %485 = vmatpush1.bf16.msra.mxu0 0
    %486 = vmatprep.subr.bf16.mxu0 0
    %487 = vmatpush1.bf16.msra.mxu0 0
    %488 = vmatprep.subr.bf16.mxu0 0
    %489 = vmatpush1.bf16.msra.mxu0 0
    %490 = vmatprep.subr.bf16.mxu0 0
    %491 = vmatpush1.bf16.msra.mxu0 0
    %492 = vmatprep.subr.bf16.mxu0 0
    %493 = vmatpush1.bf16.msra.mxu0 0
    %494 = vmatprep.subr.bf16.mxu0 0
    %495 = vmatpush1.bf16.msra.mxu0 0
    %496 = vmatprep.subr.bf16.mxu0 0
    %497 = vmatpush1.bf16.msra.mxu0 %v481
    %498 = vmatprep.subr.bf16.mxu0 0
    %499 = vmatpush1.bf16.msra.mxu0 %v480
    %500 = vmatprep.subr.bf16.mxu0 0
    %501 = vmatpush2.bf16.msra.mxu0 0
    %502 = vmatprep.subr.bf16.mxu0 0
    %503 = vmatpush2.bf16.msra.mxu0 0
    %504 = vmatprep.subr.bf16.mxu0 0
    %505 = vmatpush2.bf16.msra.mxu0 0
    %506 = vmatprep.subr.bf16.mxu0 0
    %507 = vmatpush2.bf16.msra.mxu0 0
    %508 = vmatprep.subr.bf16.mxu0 0
    %509 = vmatpush2.bf16.msra.mxu0 0
    %510 = vmatprep.subr.bf16.mxu0 0
    %511 = vmatpush2.bf16.msra.mxu0 0
    %512 = vmatprep.subr.bf16.mxu0 0
    %513 = vmatpush2.bf16.msra.mxu0 0
    %514 = vmatprep.subr.bf16.mxu0 0
    %515 = vmatpush2.bf16.msra.mxu0 0
    %516 = vmatprep.mubr.bf16.mxu0 0
    %517 = vmatmul.mubr.bf16.gmra.mxu0 %v50
    %v518 = vpop.f32.mrf.mxu0
    %v519 = vadd.f32 %v470, %v518
    %v520 = vpop.f32.mrf.mxu0
    %v521 = vpop.f32.mrf.mxu0
    %v522 = vadd.f32 %v470, %v521
    %v523 = vpop.f32.mrf.mxu0
    %524 = vdwg.mxu0
    %v525 = vsel %vm93, %v519, -inf
    %526 = vmax.xlane.f32.xlu0 %v525
    %v527 = vpop.xlane.xlu0 %526
    %v528 = vsel %vm93, %v522, -inf
    %529 = vmax.xlane.f32.xlu0 %v528
    %v530 = vpop.xlane.xlu0 %529
    %v531 = vsub.f32 %v519, %v527
    %v532 = vsub.f32 %v522, %v530
    %v533 = vmul.f32 %v531, 1.442695
    %v534 = vpow.pop %v533
    %v535 = vmul.f32 %v532, 1.442695
    %v536 = vpow.pop %v535
    %v537 = vsel %vm93, %v534, 0.0
    %538 = vadd.xlane.f32.xlu0 %v537
    %v539 = vpop.xlane.xlu0 %538
    %v540 = vsel %vm93, %v536, 0.0
    %541 = vadd.xlane.f32.xlu0 %v540
    %v542 = vpop.xlane.xlu0 %541
    %v543 = vrcp.pop %v539
    %v544 = vrcp.pop %v542
    %v545 = vpack.c.bf16 %v536, %v534
    %s546 = scalar_lea.vmem %s3, 24
    %v547 = vld [vmem:[%s546] sm:$0xf]
    %v548 = vld [vmem:[%s546 + $0x4] sm:$0xf]
    %v551 = vunpack.c.l.b16 %v547
    %v552 = vunpack.c.l.b16 %v548
    %v553 = vpack.c.b16 %v552, %v551
    %v556 = vsel %vm93, %v545, 0
    %558 = vmatprep.subr.bf16.mxu0 0
    %559 = vmatpush1.bf16.msra.mxu0 0
    %560 = vmatprep.subr.bf16.mxu0 0
    %561 = vmatpush1.bf16.msra.mxu0 0
    %562 = vmatprep.subr.bf16.mxu0 0
    %563 = vmatpush1.bf16.msra.mxu0 0
    %564 = vmatprep.subr.bf16.mxu0 0
    %565 = vmatpush1.bf16.msra.mxu0 0
    %566 = vmatprep.subr.bf16.mxu0 0
    %567 = vmatpush1.bf16.msra.mxu0 0
    %568 = vmatprep.subr.bf16.mxu0 0
    %569 = vmatpush1.bf16.msra.mxu0 0
    %570 = vmatprep.subr.bf16.mxu0 0
    %571 = vmatpush1.bf16.msra.mxu0 0
    %572 = vmatprep.subr.bf16.mxu0 0
    %573 = vmatpush1.bf16.msra.mxu0 %v553
    %574 = vmatprep.subr.bf16.mxu0 0
    %575 = vmatpush2.bf16.msra.mxu0 0
    %576 = vmatprep.subr.bf16.mxu0 0
    %577 = vmatpush2.bf16.msra.mxu0 0
    %578 = vmatprep.subr.bf16.mxu0 0
    %579 = vmatpush2.bf16.msra.mxu0 0
    %580 = vmatprep.subr.bf16.mxu0 0
    %581 = vmatpush2.bf16.msra.mxu0 0
    %582 = vmatprep.subr.bf16.mxu0 0
    %583 = vmatpush2.bf16.msra.mxu0 0
    %584 = vmatprep.subr.bf16.mxu0 0
    %585 = vmatpush2.bf16.msra.mxu0 0
    %586 = vmatprep.subr.bf16.mxu0 0
    %587 = vmatpush2.bf16.msra.mxu0 0
    %588 = vmatprep.subr.bf16.mxu0 0
    %589 = vmatpush2.bf16.msra.mxu0 0
    %590 = vmatprep.mubr.bf16.mxu0 0
    %591 = vmatmul.mubr.bf16.gmra.mxu0 %v556
    %v592 = vpop.f32.mrf.mxu0
    %v593 = vadd.f32 0.0, %v592
    %v594 = vpop.f32.mrf.mxu0
    %v595 = vpop.f32.mrf.mxu0
    %v596 = vadd.f32 0.0, %v595
    %v597 = vpop.f32.mrf.mxu0
    %598 = vdwg.mxu0
    %v599 = vmul.f32 %v593, %v543
    %v600 = vmul.f32 %v596, %v544
    %v601 = vadd.f32 %v457, %v599
    %v602 = vadd.f32 %v458, %v600
    %v603 = vld [vmem:[%s4] sm:$0x1]
    %v605 = vlaneseq
    %v606 = vshrl.u32 %v605, 7
    %v607 = vsub.s32 0, %v606
    %v608 = vrot.slane %v603, %v607
    %v610 = vadd.f32 %v601, %v608
    %v611 = vadd.f32 %v602, %v608
    %vm612 = vcmask 523264
    %613 = vst.msk [vmem:[#allocation2] sm:$0xff] %vm612, %v610
    %614 = vst.msk [vmem:[#allocation2 + $0x8] sm:$0xff] %vm612, %v611
    // Predicated region
    $region22: #{tpu_custom_call.1} parent=1 // pred_check
      _
    $region23: #{tpu_custom_call.1} parent=1 // pred_check_branch
      %616 = sbr.rel (0) target = $region25
    $region24: #{tpu_custom_call.1} parent=1 // pred_region
      %s618 = ssub.s32 256, 256
      %619 = vsyncadd [#allocation3], %s618
      %s620 = sshll.u32 [#allocation2], 4
      %s621 = int_to_ptr.vmem [resolvable:$true] %s620
      %626 = dma.vmem_to_hbm [thread:$0]  %s621, 256, %s5, [#allocation3], 128, 128, 8
    $region25: #{tpu_custom_call.1} parent=1 // pred_fallthru
      _
    // Predicated region
    $region26: #{tpu_custom_call.1} parent=1 // pred_check
      _
    $region27: #{tpu_custom_call.1} parent=1 // pred_check_branch
      %628 = sbr.rel (0) target = $region29
    $region28: #{tpu_custom_call.1} parent=1 // pred_region
      %629 = dma.done [#allocation3], 256
    $region29: #{tpu_custom_call.1} parent=1 // pred_fallthru
      _
    %630 = vsyncpa [#allocation3], 1

// kernel: tpu_custom_call.1
$region0: #{tpu_custom_call.1}
  #allocation0 [shape = 'u32[]', space=smem, size = 0x4, offset = 0x4, fixed_abs, tag = 'smem constant byte address 0x4 - core index']
  #allocation1 [shape = 'u32[144,128]{1,0:T(1,128)}', space=vmem, size = 0x12000, scoped, tag = 'internal scratch']
  %s0 = inlined_call_operand.vmem [shape: f32[16,32], index: 0, kind: input, shape index: {}]
  %s1 = inlined_call_operand.vmem [shape: bf16[4,32,16], index: 1, kind: input, shape index: {}]
  %s2 = inlined_call_operand.vmem [shape: f32[4,1,16], index: 2, kind: input, shape index: {}]
  %s3 = inlined_call_operand.vmem [shape: bf16[4,16,64], index: 3, kind: input, shape index: {}]
  %s4 = inlined_call_operand.vmem [shape: f32[1,64], index: 4, kind: input, shape index: {}]
  %s5 = inlined_call_operand.hbm [shape: f32[16,64], index: 5, kind: output, shape index: {}]
  %s6 = sld [smem:[#allocation0]]
  $region30: #{tpu_custom_call.1} parent=0
    _
  %s8 = ssub.s32 1, %s6
  %s9 = scalar_select 0, %s8, %s6
  $region1: #{tpu_custom_call.1} parent=0
    #allocation2 [shape = 'u8[8192]{0}', space=vmem, size = 0x2000, scoped, tag = 'output window, operand 0, single buffered']
    #allocation3 [shape = 's32[1]{0}', space=sflag, size = 0x4, scoped, tag = 'scoped memory for tpu_custom_call.1']
    %10 = vsyncpa [#allocation3], 0
    // Predicated region
    $region2: #{tpu_custom_call.1} parent=1 // pred_check
      _
    $region3: #{tpu_custom_call.1} parent=1 // pred_check_branch
      %12 = sbr.rel (0) target = $region5
    $region4: #{tpu_custom_call.1} parent=1 // pred_region
      _
    $region5: #{tpu_custom_call.1} parent=1 // pred_fallthru
      _
    // Predicated region
    $region6: #{tpu_custom_call.1} parent=1 // pred_check
      _
    $region7: #{tpu_custom_call.1} parent=1 // pred_check_branch
      %14 = sbr.rel (0) target = $region9
    $region8: #{tpu_custom_call.1} parent=1 // pred_region
      _
    $region9: #{tpu_custom_call.1} parent=1 // pred_fallthru
      _
    // Predicated region
    $region10: #{tpu_custom_call.1} parent=1 // pred_check
      _
    $region11: #{tpu_custom_call.1} parent=1 // pred_check_branch
      %16 = sbr.rel (0) target = $region13
    $region12: #{tpu_custom_call.1} parent=1 // pred_region
      _
    $region13: #{tpu_custom_call.1} parent=1 // pred_fallthru
      _
    // Predicated region
    $region14: #{tpu_custom_call.1} parent=1 // pred_check
      _
    $region15: #{tpu_custom_call.1} parent=1 // pred_check_branch
      %18 = sbr.rel (0) target = $region17
    $region16: #{tpu_custom_call.1} parent=1 // pred_region
      _
    $region17: #{tpu_custom_call.1} parent=1 // pred_fallthru
      _
    // Predicated region
    $region18: #{tpu_custom_call.1} parent=1 // pred_check
      _
    $region19: #{tpu_custom_call.1} parent=1 // pred_check_branch
      %20 = sbr.rel (0) target = $region21
    $region20: #{tpu_custom_call.1} parent=1 // pred_region
      _
    $region21: #{tpu_custom_call.1} parent=1 // pred_fallthru
      _
    %v22 = vld [vmem:[%s0] sm:$0xff]
    %v23 = vld [vmem:[%s0 + $0x8] sm:$0xff]
    %v24 = vpack.c.bf16 %v23, %v22
    %v25 = vld [vmem:[%s1] sm:$0xf]
    %v26 = vld [vmem:[%s1 + $0x4] sm:$0xf]
    %v27 = vld [vmem:[%s1 + $0x8] sm:$0xf]
    %v28 = vld [vmem:[%s1 + $0xc] sm:$0xf]
    %v29 = vld [vmem:[%s2] sm:$0x1]
    %v31 = vlaneseq
    %v32 = vshrl.u32 %v31, 7
    %v33 = vsub.s32 0, %v32
    %v34 = vrot.slane %v29, %v33
    %v40 = vunpack.c.l.b16 %v25
    %v41 = vunpack.c.l.b16 %v26
    %v42 = vunpack.c.l.b16 %v27
    %v43 = vunpack.c.l.b16 %v28
    %v44 = vpack.c.b16 %v41, %v40
    %v45 = vpack.c.b16 %v43, %v42
    %vm48 = vcmask 261120
    %v50 = vsel %vm48, %v24, 0
    %52 = vmatprep.subr.bf16.mxu0 0
    %53 = vmatpush1.bf16.msra.mxu0 0
    %54 = vmatprep.subr.bf16.mxu0 0
    %55 = vmatpush1.bf16.msra.mxu0 0
    %56 = vmatprep.subr.bf16.mxu0 0
    %57 = vmatpush1.bf16.msra.mxu0 0
    %58 = vmatprep.subr.bf16.mxu0 0
    %59 = vmatpush1.bf16.msra.mxu0 0
    %60 = vmatprep.subr.bf16.mxu0 0
    %61 = vmatpush1.bf16.msra.mxu0 0
    %62 = vmatprep.subr.bf16.mxu0 0
    %63 = vmatpush1.bf16.msra.mxu0 0
    %64 = vmatprep.subr.bf16.mxu0 0
    %65 = vmatpush1.bf16.msra.mxu0 %v45
    %66 = vmatprep.subr.bf16.mxu0 0
    %67 = vmatpush1.bf16.msra.mxu0 %v44
    %68 = vmatprep.subr.bf16.mxu0 0
    %69 = vmatpush2.bf16.msra.mxu0 0
    %70 = vmatprep.subr.bf16.mxu0 0
    %71 = vmatpush2.bf16.msra.mxu0 0
    %72 = vmatprep.subr.bf16.mxu0 0
    %73 = vmatpush2.bf16.msra.mxu0 0
    %74 = vmatprep.subr.bf16.mxu0 0
    %75 = vmatpush2.bf16.msra.mxu0 0
    %76 = vmatprep.subr.bf16.mxu0 0
    %77 = vmatpush2.bf16.msra.mxu0 0
    %78 = vmatprep.subr.bf16.mxu0 0
    %79 = vmatpush2.bf16.msra.mxu0 0
    %80 = vmatprep.subr.bf16.mxu0 0
    %81 = vmatpush2.bf16.msra.mxu0 0
    %82 = vmatprep.subr.bf16.mxu0 0
    %83 = vmatpush2.bf16.msra.mxu0 0
    %84 = vmatprep.mubr.bf16.mxu0 0
    %85 = vmatmul.mubr.bf16.gmra.mxu0 %v50
    %v86 = vpop.f32.mrf.mxu0
    %v87 = vadd.f32 %v34, %v86
    %v88 = vpop.f32.mrf.mxu0
    %v89 = vpop.f32.mrf.mxu0
    %v90 = vadd.f32 %v34, %v89
    %v91 = vpop.f32.mrf.mxu0
    %92 = vdwg.mxu0
    %vm93 = vcmask 130048
    %v94 = vsel %vm93, %v87, -inf
    %95 = vmax.xlane.f32.xlu0 %v94
    %v96 = vpop.xlane.xlu0 %95
    %v97 = vsel %vm93, %v90, -inf
    %98 = vmax.xlane.f32.xlu0 %v97
    %v99 = vpop.xlane.xlu0 %98
    %v100 = vsub.f32 %v87, %v96
    %v101 = vsub.f32 %v90, %v99
    %v102 = vmul.f32 %v100, 1.442695
    %v103 = vpow.pop %v102
    %v104 = vmul.f32 %v101, 1.442695
    %v105 = vpow.pop %v104
    %v106 = vsel %vm93, %v103, 0.0
    %107 = vadd.xlane.f32.xlu0 %v106
    %v108 = vpop.xlane.xlu0 %107
    %v109 = vsel %vm93, %v105, 0.0
    %110 = vadd.xlane.f32.xlu0 %v109
    %v111 = vpop.xlane.xlu0 %110
    %v112 = vrcp.pop %v108
    %v113 = vrcp.pop %v111
    %v114 = vpack.c.bf16 %v105, %v103
    %v115 = vld [vmem:[%s3] sm:$0xf]
    %v116 = vld [vmem:[%s3 + $0x4] sm:$0xf]
    %v119 = vunpack.c.l.b16 %v115
    %v120 = vunpack.c.l.b16 %v116
    %v121 = vpack.c.b16 %v120, %v119
    %v124 = vsel %vm93, %v114, 0
    %126 = vmatprep.subr.bf16.mxu0 0
    %127 = vmatpush1.bf16.msra.mxu0 0
    %128 = vmatprep.subr.bf16.mxu0 0
    %129 = vmatpush1.bf16.msra.mxu0 0
    %130 = vmatprep.subr.bf16.mxu0 0
    %131 = vmatpush1.bf16.msra.mxu0 0
    %132 = vmatprep.subr.bf16.mxu0 0
    %133 = vmatpush1.bf16.msra.mxu0 0
    %134 = vmatprep.subr.bf16.mxu0 0
    %135 = vmatpush1.bf16.msra.mxu0 0
    %136 = vmatprep.subr.bf16.mxu0 0
    %137 = vmatpush1.bf16.msra.mxu0 0
    %138 = vmatprep.subr.bf16.mxu0 0
    %139 = vmatpush1.bf16.msra.mxu0 0
    %140 = vmatprep.subr.bf16.mxu0 0
    %141 = vmatpush1.bf16.msra.mxu0 %v121
    %142 = vmatprep.subr.bf16.mxu0 0
    %143 = vmatpush2.bf16.msra.mxu0 0
    %144 = vmatprep.subr.bf16.mxu0 0
    %145 = vmatpush2.bf16.msra.mxu0 0
    %146 = vmatprep.subr.bf16.mxu0 0
    %147 = vmatpush2.bf16.msra.mxu0 0
    %148 = vmatprep.subr.bf16.mxu0 0
    %149 = vmatpush2.bf16.msra.mxu0 0
    %150 = vmatprep.subr.bf16.mxu0 0
    %151 = vmatpush2.bf16.msra.mxu0 0
    %152 = vmatprep.subr.bf16.mxu0 0
    %153 = vmatpush2.bf16.msra.mxu0 0
    %154 = vmatprep.subr.bf16.mxu0 0
    %155 = vmatpush2.bf16.msra.mxu0 0
    %156 = vmatprep.subr.bf16.mxu0 0
    %157 = vmatpush2.bf16.msra.mxu0 0
    %158 = vmatprep.mubr.bf16.mxu0 0
    %159 = vmatmul.mubr.bf16.gmra.mxu0 %v124
    %v160 = vpop.f32.mrf.mxu0
    %v161 = vadd.f32 0.0, %v160
    %v162 = vpop.f32.mrf.mxu0
    %v163 = vpop.f32.mrf.mxu0
    %v164 = vadd.f32 0.0, %v163
    %v165 = vpop.f32.mrf.mxu0
    %166 = vdwg.mxu0
    %v167 = vmul.f32 %v161, %v112
    %v168 = vmul.f32 %v164, %v113
    %v169 = vadd.f32 %v167, 0.0
    %v170 = vadd.f32 %v168, 0.0
    %s171 = scalar_lea.vmem %s1, 16
    %v172 = vld [vmem:[%s171] sm:$0xf]
    %v173 = vld [vmem:[%s171 + $0x4] sm:$0xf]
    %v174 = vld [vmem:[%s171 + $0x8] sm:$0xf]
    %v175 = vld [vmem:[%s171 + $0xc] sm:$0xf]
    %s176 = scalar_lea.vmem %s2, 1
    %v177 = vld [vmem:[%s176] sm:$0x1]
    %v179 = vlaneseq
    %v180 = vshrl.u32 %v179, 7
    %v181 = vsub.s32 0, %v180
    %v182 = vrot.slane %v177, %v181
    %v188 = vunpack.c.l.b16 %v172
    %v189 = vunpack.c.l.b16 %v173
    %v190 = vunpack.c.l.b16 %v174
    %v191 = vunpack.c.l.b16 %v175
    %v192 = vpack.c.b16 %v189, %v188
    %v193 = vpack.c.b16 %v191, %v190
    %196 = vmatprep.subr.bf16.mxu0 0
    %197 = vmatpush1.bf16.msra.mxu0 0
    %198 = vmatprep.subr.bf16.mxu0 0
    %199 = vmatpush1.bf16.msra.mxu0 0
    %200 = vmatprep.subr.bf16.mxu0 0
    %201 = vmatpush1.bf16.msra.mxu0 0
    %202 = vmatprep.subr.bf16.mxu0 0
    %203 = vmatpush1.bf16.msra.mxu0 0
    %204 = vmatprep.subr.bf16.mxu0 0
    %205 = vmatpush1.bf16.msra.mxu0 0
    %206 = vmatprep.subr.bf16.mxu0 0
    %207 = vmatpush1.bf16.msra.mxu0 0
    %208 = vmatprep.subr.bf16.mxu0 0
    %209 = vmatpush1.bf16.msra.mxu0 %v193
    %210 = vmatprep.subr.bf16.mxu0 0
    %211 = vmatpush1.bf16.msra.mxu0 %v192
    %212 = vmatprep.subr.bf16.mxu0 0
    %213 = vmatpush2.bf16.msra.mxu0 0
    %214 = vmatprep.subr.bf16.mxu0 0
    %215 = vmatpush2.bf16.msra.mxu0 0
    %216 = vmatprep.subr.bf16.mxu0 0
    %217 = vmatpush2.bf16.msra.mxu0 0
    %218 = vmatprep.subr.bf16.mxu0 0
    %219 = vmatpush2.bf16.msra.mxu0 0
    %220 = vmatprep.subr.bf16.mxu0 0
    %221 = vmatpush2.bf16.msra.mxu0 0
    %222 = vmatprep.subr.bf16.mxu0 0
    %223 = vmatpush2.bf16.msra.mxu0 0
    %224 = vmatprep.subr.bf16.mxu0 0
    %225 = vmatpush2.bf16.msra.mxu0 0
    %226 = vmatprep.subr.bf16.mxu0 0
    %227 = vmatpush2.bf16.msra.mxu0 0
    %228 = vmatprep.mubr.bf16.mxu0 0
    %229 = vmatmul.mubr.bf16.gmra.mxu0 %v50
    %v230 = vpop.f32.mrf.mxu0
    %v231 = vadd.f32 %v182, %v230
    %v232 = vpop.f32.mrf.mxu0
    %v233 = vpop.f32.mrf.mxu0
    %v234 = vadd.f32 %v182, %v233
    %v235 = vpop.f32.mrf.mxu0
    %236 = vdwg.mxu0
    %v237 = vsel %vm93, %v231, -inf
    %238 = vmax.xlane.f32.xlu0 %v237
    %v239 = vpop.xlane.xlu0 %238
    %v240 = vsel %vm93, %v234, -inf
    %241 = vmax.xlane.f32.xlu0 %v240
    %v242 = vpop.xlane.xlu0 %241
    %v243 = vsub.f32 %v231, %v239
    %v244 = vsub.f32 %v234, %v242
    %v245 = vmul.f32 %v243, 1.442695
    %v246 = vpow.pop %v245
    %v247 = vmul.f32 %v244, 1.442695
    %v248 = vpow.pop %v247
    %v249 = vsel %vm93, %v246, 0.0
    %250 = vadd.xlane.f32.xlu0 %v249
    %v251 = vpop.xlane.xlu0 %250
    %v252 = vsel %vm93, %v248, 0.0
    %253 = vadd.xlane.f32.xlu0 %v252
    %v254 = vpop.xlane.xlu0 %253
    %v255 = vrcp.pop %v251
    %v256 = vrcp.pop %v254
    %v257 = vpack.c.bf16 %v248, %v246
    %s258 = scalar_lea.vmem %s3, 8
    %v259 = vld [vmem:[%s258] sm:$0xf]
    %v260 = vld [vmem:[%s258 + $0x4] sm:$0xf]
    %v263 = vunpack.c.l.b16 %v259
    %v264 = vunpack.c.l.b16 %v260
    %v265 = vpack.c.b16 %v264, %v263
    %v268 = vsel %vm93, %v257, 0
    %270 = vmatprep.subr.bf16.mxu0 0
    %271 = vmatpush1.bf16.msra.mxu0 0
    %272 = vmatprep.subr.bf16.mxu0 0
    %273 = vmatpush1.bf16.msra.mxu0 0
    %274 = vmatprep.subr.bf16.mxu0 0
    %275 = vmatpush1.bf16.msra.mxu0 0
    %276 = vmatprep.subr.bf16.mxu0 0
    %277 = vmatpush1.bf16.msra.mxu0 0
    %278 = vmatprep.subr.bf16.mxu0 0
    %279 = vmatpush1.bf16.msra.mxu0 0
    %280 = vmatprep.subr.bf16.mxu0 0
    %281 = vmatpush1.bf16.msra.mxu0 0
    %282 = vmatprep.subr.bf16.mxu0 0
    %283 = vmatpush1.bf16.msra.mxu0 0
    %284 = vmatprep.subr.bf16.mxu0 0
    %285 = vmatpush1.bf16.msra.mxu0 %v265
    %286 = vmatprep.subr.bf16.mxu0 0
    %287 = vmatpush2.bf16.msra.mxu0 0
    %288 = vmatprep.subr.bf16.mxu0 0
    %289 = vmatpush2.bf16.msra.mxu0 0
    %290 = vmatprep.subr.bf16.mxu0 0
    %291 = vmatpush2.bf16.msra.mxu0 0
    %292 = vmatprep.subr.bf16.mxu0 0
    %293 = vmatpush2.bf16.msra.mxu0 0
    %294 = vmatprep.subr.bf16.mxu0 0
    %295 = vmatpush2.bf16.msra.mxu0 0
    %296 = vmatprep.subr.bf16.mxu0 0
    %297 = vmatpush2.bf16.msra.mxu0 0
    %298 = vmatprep.subr.bf16.mxu0 0
    %299 = vmatpush2.bf16.msra.mxu0 0
    %300 = vmatprep.subr.bf16.mxu0 0
    %301 = vmatpush2.bf16.msra.mxu0 0
    %302 = vmatprep.mubr.bf16.mxu0 0
    %303 = vmatmul.mubr.bf16.gmra.mxu0 %v268
    %v304 = vpop.f32.mrf.mxu0
    %v305 = vadd.f32 0.0, %v304
    %v306 = vpop.f32.mrf.mxu0
    %v307 = vpop.f32.mrf.mxu0
    %v308 = vadd.f32 0.0, %v307
    %v309 = vpop.f32.mrf.mxu0
    %310 = vdwg.mxu0
    %v311 = vmul.f32 %v305, %v255
    %v312 = vmul.f32 %v308, %v256
    %v313 = vadd.f32 %v169, %v311
    %v314 = vadd.f32 %v170, %v312
    %s315 = scalar_lea.vmem %s1, 32
    %v316 = vld [vmem:[%s315] sm:$0xf]
    %v317 = vld [vmem:[%s315 + $0x4] sm:$0xf]
    %v318 = vld [vmem:[%s315 + $0x8] sm:$0xf]
    %v319 = vld [vmem:[%s315 + $0xc] sm:$0xf]
    %s320 = scalar_lea.vmem %s2, 2
    %v321 = vld [vmem:[%s320] sm:$0x1]
    %v323 = vlaneseq
    %v324 = vshrl.u32 %v323, 7
    %v325 = vsub.s32 0, %v324
    %v326 = vrot.slane %v321, %v325
    %v332 = vunpack.c.l.b16 %v316
    %v333 = vunpack.c.l.b16 %v317
    %v334 = vunpack.c.l.b16 %v318
    %v335 = vunpack.c.l.b16 %v319
    %v336 = vpack.c.b16 %v333, %v332
    %v337 = vpack.c.b16 %v335, %v334
    %340 = vmatprep.subr.bf16.mxu0 0
    %341 = vmatpush1.bf16.msra.mxu0 0
    %342 = vmatprep.subr.bf16.mxu0 0
    %343 = vmatpush1.bf16.msra.mxu0 0
    %344 = vmatprep.subr.bf16.mxu0 0
    %345 = vmatpush1.bf16.msra.mxu0 0
    %346 = vmatprep.subr.bf16.mxu0 0
    %347 = vmatpush1.bf16.msra.mxu0 0
    %348 = vmatprep.subr.bf16.mxu0 0
    %349 = vmatpush1.bf16.msra.mxu0 0
    %350 = vmatprep.subr.bf16.mxu0 0
    %351 = vmatpush1.bf16.msra.mxu0 0
    %352 = vmatprep.subr.bf16.mxu0 0
    %353 = vmatpush1.bf16.msra.mxu0 %v337
    %354 = vmatprep.subr.bf16.mxu0 0
    %355 = vmatpush1.bf16.msra.mxu0 %v336
    %356 = vmatprep.subr.bf16.mxu0 0
    %357 = vmatpush2.bf16.msra.mxu0 0
    %358 = vmatprep.subr.bf16.mxu0 0
    %359 = vmatpush2.bf16.msra.mxu0 0
    %360 = vmatprep.subr.bf16.mxu0 0
    %361 = vmatpush2.bf16.msra.mxu0 0
    %362 = vmatprep.subr.bf16.mxu0 0
    %363 = vmatpush2.bf16.msra.mxu0 0
    %364 = vmatprep.subr.bf16.mxu0 0
    %365 = vmatpush2.bf16.msra.mxu0 0
    %366 = vmatprep.subr.bf16.mxu0 0
    %367 = vmatpush2.bf16.msra.mxu0 0
    %368 = vmatprep.subr.bf16.mxu0 0
    %369 = vmatpush2.bf16.msra.mxu0 0
    %370 = vmatprep.subr.bf16.mxu0 0
    %371 = vmatpush2.bf16.msra.mxu0 0
    %372 = vmatprep.mubr.bf16.mxu0 0
    %373 = vmatmul.mubr.bf16.gmra.mxu0 %v50
    %v374 = vpop.f32.mrf.mxu0
    %v375 = vadd.f32 %v326, %v374
    %v376 = vpop.f32.mrf.mxu0
    %v377 = vpop.f32.mrf.mxu0
    %v378 = vadd.f32 %v326, %v377
    %v379 = vpop.f32.mrf.mxu0
    %380 = vdwg.mxu0
    %v381 = vsel %vm93, %v375, -inf
    %382 = vmax.xlane.f32.xlu0 %v381
    %v383 = vpop.xlane.xlu0 %382
    %v384 = vsel %vm93, %v378, -inf
    %385 = vmax.xlane.f32.xlu0 %v384
    %v386 = vpop.xlane.xlu0 %385
    %v387 = vsub.f32 %v375, %v383
    %v388 = vsub.f32 %v378, %v386
    %v389 = vmul.f32 %v387, 1.442695
    %v390 = vpow.pop %v389
    %v391 = vmul.f32 %v388, 1.442695
    %v392 = vpow.pop %v391
    %v393 = vsel %vm93, %v390, 0.0
    %394 = vadd.xlane.f32.xlu0 %v393
    %v395 = vpop.xlane.xlu0 %394
    %v396 = vsel %vm93, %v392, 0.0
    %397 = vadd.xlane.f32.xlu0 %v396
    %v398 = vpop.xlane.xlu0 %397
    %v399 = vrcp.pop %v395
    %v400 = vrcp.pop %v398
    %v401 = vpack.c.bf16 %v392, %v390
    %s402 = scalar_lea.vmem %s3, 16
    %v403 = vld [vmem:[%s402] sm:$0xf]
    %v404 = vld [vmem:[%s402 + $0x4] sm:$0xf]
    %v407 = vunpack.c.l.b16 %v403
    %v408 = vunpack.c.l.b16 %v404
    %v409 = vpack.c.b16 %v408, %v407
    %v412 = vsel %vm93, %v401, 0
    %414 = vmatprep.subr.bf16.mxu0 0
    %415 = vmatpush1.bf16.msra.mxu0 0
    %416 = vmatprep.subr.bf16.mxu0 0
    %417 = vmatpush1.bf16.msra.mxu0 0
    %418 = vmatprep.subr.bf16.mxu0 0
    %419 = vmatpush1.bf16.msra.mxu0 0
    %420 = vmatprep.subr.bf16.mxu0 0
    %421 = vmatpush1.bf16.msra.mxu0 0
    %422 = vmatprep.subr.bf16.mxu0 0
    %423 = vmatpush1.bf16.msra.mxu0 0
    %424 = vmatprep.subr.bf16.mxu0 0
    %425 = vmatpush1.bf16.msra.mxu0 0
    %426 = vmatprep.subr.bf16.mxu0 0
    %427 = vmatpush1.bf16.msra.mxu0 0
    %428 = vmatprep.subr.bf16.mxu0 0
    %429 = vmatpush1.bf16.msra.mxu0 %v409
    %430 = vmatprep.subr.bf16.mxu0 0
    %431 = vmatpush2.bf16.msra.mxu0 0
    %432 = vmatprep.subr.bf16.mxu0 0
    %433 = vmatpush2.bf16.msra.mxu0 0
    %434 = vmatprep.subr.bf16.mxu0 0
    %435 = vmatpush2.bf16.msra.mxu0 0
    %436 = vmatprep.subr.bf16.mxu0 0
    %437 = vmatpush2.bf16.msra.mxu0 0
    %438 = vmatprep.subr.bf16.mxu0 0
    %439 = vmatpush2.bf16.msra.mxu0 0
    %440 = vmatprep.subr.bf16.mxu0 0
    %441 = vmatpush2.bf16.msra.mxu0 0
    %442 = vmatprep.subr.bf16.mxu0 0
    %443 = vmatpush2.bf16.msra.mxu0 0
    %444 = vmatprep.subr.bf16.mxu0 0
    %445 = vmatpush2.bf16.msra.mxu0 0
    %446 = vmatprep.mubr.bf16.mxu0 0
    %447 = vmatmul.mubr.bf16.gmra.mxu0 %v412
    %v448 = vpop.f32.mrf.mxu0
    %v449 = vadd.f32 0.0, %v448
    %v450 = vpop.f32.mrf.mxu0
    %v451 = vpop.f32.mrf.mxu0
    %v452 = vadd.f32 0.0, %v451
    %v453 = vpop.f32.mrf.mxu0
    %454 = vdwg.mxu0
    %v455 = vmul.f32 %v449, %v399
    %v456 = vmul.f32 %v452, %v400
    %v457 = vadd.f32 %v313, %v455
    %v458 = vadd.f32 %v314, %v456
    %s459 = scalar_lea.vmem %s1, 48
    %v460 = vld [vmem:[%s459] sm:$0xf]
    %v461 = vld [vmem:[%s459 + $0x4] sm:$0xf]
    %v462 = vld [vmem:[%s459 + $0x8] sm:$0xf]
    %v463 = vld [vmem:[%s459 + $0xc] sm:$0xf]
    %s464 = scalar_lea.vmem %s2, 3
    %v465 = vld [vmem:[%s464] sm:$0x1]
    %v467 = vlaneseq
    %v468 = vshrl.u32 %v467, 7
    %v469 = vsub.s32 0, %v468
    %v470 = vrot.slane %v465, %v469
    %v476 = vunpack.c.l.b16 %v460
    %v477 = vunpack.c.l.b16 %v461
    %v478 = vunpack.c.l.b16 %v462
    %v479 = vunpack.c.l.b16 %v463
    %v480 = vpack.c.b16 %v477, %v476
    %v481 = vpack.c.b16 %v479, %v478
    %484 = vmatprep.subr.bf16.mxu0 0
    %485 = vmatpush1.bf16.msra.mxu0 0
    %486 = vmatprep.subr.bf16.mxu0 0
    %487 = vmatpush1.bf16.msra.mxu0 0
    %488 = vmatprep.subr.bf16.mxu0 0
    %489 = vmatpush1.bf16.msra.mxu0 0
    %490 = vmatprep.subr.bf16.mxu0 0
    %491 = vmatpush1.bf16.msra.mxu0 0
    %492 = vmatprep.subr.bf16.mxu0 0
    %493 = vmatpush1.bf16.msra.mxu0 0
    %494 = vmatprep.subr.bf16.mxu0 0
    %495 = vmatpush1.bf16.msra.mxu0 0
    %496 = vmatprep.subr.bf16.mxu0 0
    %497 = vmatpush1.bf16.msra.mxu0 %v481
    %498 = vmatprep.subr.bf16.mxu0 0
    %499 = vmatpush1.bf16.msra.mxu0 %v480
    %500 = vmatprep.subr.bf16.mxu0 0
    %501 = vmatpush2.bf16.msra.mxu0 0
    %502 = vmatprep.subr.bf16.mxu0 0
    %503 = vmatpush2.bf16.msra.mxu0 0
    %504 = vmatprep.subr.bf16.mxu0 0
    %505 = vmatpush2.bf16.msra.mxu0 0
    %506 = vmatprep.subr.bf16.mxu0 0
    %507 = vmatpush2.bf16.msra.mxu0 0
    %508 = vmatprep.subr.bf16.mxu0 0
    %509 = vmatpush2.bf16.msra.mxu0 0
    %510 = vmatprep.subr.bf16.mxu0 0
    %511 = vmatpush2.bf16.msra.mxu0 0
    %512 = vmatprep.subr.bf16.mxu0 0
    %513 = vmatpush2.bf16.msra.mxu0 0
    %514 = vmatprep.subr.bf16.mxu0 0
    %515 = vmatpush2.bf16.msra.mxu0 0
    %516 = vmatprep.mubr.bf16.mxu0 0
    %517 = vmatmul.mubr.bf16.gmra.mxu0 %v50
    %v518 = vpop.f32.mrf.mxu0
    %v519 = vadd.f32 %v470, %v518
    %v520 = vpop.f32.mrf.mxu0
    %v521 = vpop.f32.mrf.mxu0
    %v522 = vadd.f32 %v470, %v521
    %v523 = vpop.f32.mrf.mxu0
    %524 = vdwg.mxu0
    %v525 = vsel %vm93, %v519, -inf
    %526 = vmax.xlane.f32.xlu0 %v525
    %v527 = vpop.xlane.xlu0 %526
    %v528 = vsel %vm93, %v522, -inf
    %529 = vmax.xlane.f32.xlu0 %v528
    %v530 = vpop.xlane.xlu0 %529
    %v531 = vsub.f32 %v519, %v527
    %v532 = vsub.f32 %v522, %v530
    %v533 = vmul.f32 %v531, 1.442695
    %v534 = vpow.pop %v533
    %v535 = vmul.f32 %v532, 1.442695
    %v536 = vpow.pop %v535
    %v537 = vsel %vm93, %v534, 0.0
    %538 = vadd.xlane.f32.xlu0 %v537
    %v539 = vpop.xlane.xlu0 %538
    %v540 = vsel %vm93, %v536, 0.0
    %541 = vadd.xlane.f32.xlu0 %v540
    %v542 = vpop.xlane.xlu0 %541
    %v543 = vrcp.pop %v539
    %v544 = vrcp.pop %v542
    %v545 = vpack.c.bf16 %v536, %v534
    %s546 = scalar_lea.vmem %s3, 24
    %v547 = vld [vmem:[%s546] sm:$0xf]
    %v548 = vld [vmem:[%s546 + $0x4] sm:$0xf]
    %v551 = vunpack.c.l.b16 %v547
    %v552 = vunpack.c.l.b16 %v548
    %v553 = vpack.c.b16 %v552, %v551
    %v556 = vsel %vm93, %v545, 0
    %558 = vmatprep.subr.bf16.mxu0 0
    %559 = vmatpush1.bf16.msra.mxu0 0
    %560 = vmatprep.subr.bf16.mxu0 0
    %561 = vmatpush1.bf16.msra.mxu0 0
    %562 = vmatprep.subr.bf16.mxu0 0
    %563 = vmatpush1.bf16.msra.mxu0 0
    %564 = vmatprep.subr.bf16.mxu0 0
    %565 = vmatpush1.bf16.msra.mxu0 0
    %566 = vmatprep.subr.bf16.mxu0 0
    %567 = vmatpush1.bf16.msra.mxu0 0
    %568 = vmatprep.subr.bf16.mxu0 0
    %569 = vmatpush1.bf16.msra.mxu0 0
    %570 = vmatprep.subr.bf16.mxu0 0
    %571 = vmatpush1.bf16.msra.mxu0 0
    %572 = vmatprep.subr.bf16.mxu0 0
    %573 = vmatpush1.bf16.msra.mxu0 %v553
    %574 = vmatprep.subr.bf16.mxu0 0
    %575 = vmatpush2.bf16.msra.mxu0 0
    %576 = vmatprep.subr.bf16.mxu0 0
    %577 = vmatpush2.bf16.msra.mxu0 0
    %578 = vmatprep.subr.bf16.mxu0 0
    %579 = vmatpush2.bf16.msra.mxu0 0
    %580 = vmatprep.subr.bf16.mxu0 0
    %581 = vmatpush2.bf16.msra.mxu0 0
    %582 = vmatprep.subr.bf16.mxu0 0
    %583 = vmatpush2.bf16.msra.mxu0 0
    %584 = vmatprep.subr.bf16.mxu0 0
    %585 = vmatpush2.bf16.msra.mxu0 0
    %586 = vmatprep.subr.bf16.mxu0 0
    %587 = vmatpush2.bf16.msra.mxu0 0
    %588 = vmatprep.subr.bf16.mxu0 0
    %589 = vmatpush2.bf16.msra.mxu0 0
    %590 = vmatprep.mubr.bf16.mxu0 0
    %591 = vmatmul.mubr.bf16.gmra.mxu0 %v556
    %v592 = vpop.f32.mrf.mxu0
    %v593 = vadd.f32 0.0, %v592
    %v594 = vpop.f32.mrf.mxu0
    %v595 = vpop.f32.mrf.mxu0
    %v596 = vadd.f32 0.0, %v595
    %v597 = vpop.f32.mrf.mxu0
    %598 = vdwg.mxu0
    %v599 = vmul.f32 %v593, %v543
    %v600 = vmul.f32 %v596, %v544
    %v601 = vadd.f32 %v457, %v599
    %v602 = vadd.f32 %v458, %v600
    %v603 = vld [vmem:[%s4] sm:$0x1]
    %v605 = vlaneseq
    %v606 = vshrl.u32 %v605, 7
    %v607 = vsub.s32 0, %v606
    %v608 = vrot.slane %v603, %v607
    %v610 = vadd.f32 %v601, %v608
    %v611 = vadd.f32 %v602, %v608
    %vm612 = vcmask 523264
    %613 = vst.msk [vmem:[#allocation2] sm:$0xff] %vm612, %v610
    %614 = vst.msk [vmem:[#allocation2 + $0x8] sm:$0xff] %vm612, %v611
    // Predicated region
    $region22: #{tpu_custom_call.1} parent=1 // pred_check
      _
    $region23: #{tpu_custom_call.1} parent=1 // pred_check_branch
      %616 = sbr.rel (0) target = $region25
    $region24: #{tpu_custom_call.1} parent=1 // pred_region
      %s618 = ssub.s32 256, 256
      %619 = vsyncadd [#allocation3], %s618
      %s620 = sshll.u32 [#allocation2], 4
      %s621 = int_to_ptr.vmem [resolvable:$true] %s620
      %626 = dma.vmem_to_hbm [thread:$0]  %s621, 256, %s5, [#allocation3], 128, 128, 8
    $region25: #{tpu_custom_call.1} parent=1 // pred_fallthru
      _
    // Predicated region
    $region26: #{tpu_custom_call.1} parent=1 // pred_check
      _
    $region27: #{tpu_custom_call.1} parent=1 // pred_check_branch
      %628 = sbr.rel (0) target = $region29
    $region28: #{tpu_custom_call.1} parent=1 // pred_region
      %629 = dma.done [#allocation3], 256
    $region29: #{tpu_custom_call.1} parent=1 // pred_fallthru
      _
    %630 = vsyncpa [#allocation3], 1

</llo_original>
